<compile_context>
chip_gen: v7x
topology: tpu7x:2x2x1
jax: 0.10.0
libtpu: 0.0.40
codegen_flags: <defaults>
</compile_context>

<pallas_src>
import math

import jax
import jax.numpy as jnp
from jax.experimental import pallas as pl
from jax.experimental.pallas import tpu as pltpu


# ----------------------------------------------------------------------------
# Fused Pallas kernel
# ----------------------------------------------------------------------------
def _make_fused_lstm_kernel(n_layers, T, BB, H, O):
    """Builds the fused kernel.

    Ref order:
      inputs : x (T, BB, D0) f32, h0 (L, BB, H) f32, c0 (L, BB, H) f32,
               [wih_t (D_l, 4H) bf16, whh_t (H, 4H) bf16, b (1, 4H) f32] * L,
               fc_w_t (H, O) f32, fc_b (1, O) f32
      outputs: sig (BB, O) f32, h_n (L, BB, H) f32, c_n (L, BB, H) f32
      scratch: seq (T*BB, H) f32
    """

    def kernel(*refs):
        it = iter(refs)
        x_ref = next(it)
        h0_ref = next(it)
        c0_ref = next(it)
        layer_refs = [(next(it), next(it), next(it)) for _ in range(n_layers)]
        fcw_ref = next(it)
        fcb_ref = next(it)
        sig_ref = next(it)
        hN_ref = next(it)
        cN_ref = next(it)
        seq_ref = next(it)                                 # VMEM scratch

        D0 = x_ref.shape[-1]
        # (T, BB, D0) -> (T*BB, D0): BB is a sublane multiple, layout-free.
        layer_in = x_ref[...].reshape(T * BB, D0).astype(jnp.bfloat16)

        h = None
        for l, (wih_ref, whh_ref, b_ref) in enumerate(layer_refs):
            # Hoisted input projection (+ fused, pre-scaled bias) for the whole
            # sequence: one big bf16 MXU matmul off the serial critical path.
            xproj = (jnp.dot(layer_in, wih_ref[...],
                             preferred_element_type=jnp.float32)
                     + b_ref[...])                         # (T*BB, 4H) f32
            whh = whh_ref[...]                             # (H, 4H) bf16, once
            h = h0_ref[l]                                  # (BB, H) f32
            c = c0_ref[l]

            # T is small & static: full unroll -> constant, tile-aligned slices.
            for t in range(T):
                gates = xproj[t * BB:(t + 1) * BB, :] + jnp.dot(
                    h.astype(jnp.bfloat16), whh,
                    preferred_element_type=jnp.float32)    # (BB, 4H) f32
                # i/f/o columns were pre-scaled by 0.5 in the wrapper, so one
                # full 128-lane tanh covers all four gates (PyTorch order
                # i, f, g, o); sigmoid(z) = 0.5*tanh(z/2) + 0.5.
                tg = jnp.tanh(gates)
                i_g = 0.5 * tg[:, 0 * H:1 * H] + 0.5
                f_g = 0.5 * tg[:, 1 * H:2 * H] + 0.5
                g_g = tg[:, 2 * H:3 * H]
                o_g = 0.5 * tg[:, 3 * H:4 * H] + 0.5
                c = f_g * c + i_g * g_g
                h = o_g * jnp.tanh(c)
                if l < n_layers - 1:
                    # Stream inner-layer activations into VMEM scratch; the
                    # last layer never stores its per-step outputs.
                    seq_ref[t * BB:(t + 1) * BB, :] = h

            # Final states written once per layer (not every step).
            hN_ref[l] = h
            cN_ref[l] = c

            # TODO(synk): inter-layer LSTM dropout (p=0.5) and nn.Dropout(0.3)
            # are identity in inference mode; training-mode dropout not done.
            if l < n_layers - 1:
                layer_in = seq_ref[...].astype(jnp.bfloat16)   # (T*BB, H)

        # FC + sigmoid only on the last time step of the last layer; the
        # module's `out.view(B, -1)[:, -1]` only ever reads that row.
        sig_ref[...] = jax.nn.sigmoid(
            jnp.dot(h, fcw_ref[...], preferred_element_type=jnp.float32)
            + fcb_ref[...])

    return kernel


# ----------------------------------------------------------------------------
# Wrapper
# ----------------------------------------------------------------------------
def lstm_forward(params, x, hidden):
    """Reproduces LSTM.forward (eval mode): returns (sig_out (B,), (h_n, c_n))."""
    h0, c0 = hidden                                  # each (L, B, H)
    B, T, D0 = x.shape
    L, _, H = h0.shape
    O = params["fc_w_t"].shape[-1]

    # Pad batch to a sublane multiple (8); pick a batch block BB (MXU M dim is
    # free up to ~256, so keep blocks big — only split when batch is large,
    # which also lets v7x's second TensorCore pick up blocks).
    BP = max(8, ((B + 7) // 8) * 8)
    BB = BP if BP <= 128 else 128
    BP = ((BP + BB - 1) // BB) * BB
    pad = BP - B

    x_p = jnp.pad(x, ((0, pad), (0, 0), (0, 0)))
    h0_p = jnp.pad(h0, ((0, 0), (0, pad), (0, 0)))
    c0_p = jnp.pad(c0, ((0, 0), (0, pad), (0, 0)))
    x_tm = jnp.transpose(x_p, (1, 0, 2))             # (T, BP, D0) time-major

    # Pre-scale i/f/o gate columns by 0.5 so the kernel can use a single
    # full-width tanh (sigmoid(z) = 0.5*tanh(z/2) + 0.5).  Gate order: i,f,g,o.
    gate_scale = jnp.concatenate([
        jnp.full((H,), 0.5, jnp.float32), jnp.full((H,), 0.5, jnp.float32),
        jnp.ones((H,), jnp.float32), jnp.full((H,), 0.5, jnp.float32)])

    args = [x_tm, h0_p, c0_p]
    in_specs = [
        pl.BlockSpec((T, BB, D0), lambda b: (0, b, 0)),
        pl.BlockSpec((L, BB, H), lambda b: (0, b, 0)),
        pl.BlockSpec((L, BB, H), lambda b: (0, b, 0)),
    ]
    for p in params["lstm"]:
        wih = (p["wih_t"] * gate_scale[None, :]).astype(jnp.bfloat16)
        whh = (p["whh_t"] * gate_scale[None, :]).astype(jnp.bfloat16)
        b = p["b"] * gate_scale[None, :]
        args += [wih, whh, b]
        in_specs += [pl.BlockSpec(wih.shape, lambda b_: (0, 0)),
                     pl.BlockSpec(whh.shape, lambda b_: (0, 0)),
                     pl.BlockSpec(b.shape, lambda b_: (0, 0))]
    args += [params["fc_w_t"], params["fc_b"]]
    in_specs += [pl.BlockSpec(params["fc_w_t"].shape, lambda b_: (0, 0)),
                 pl.BlockSpec(params["fc_b"].shape, lambda b_: (0, 0))]

    out_shape = (jax.ShapeDtypeStruct((BP, O), jnp.float32),
                 jax.ShapeDtypeStruct((L, BP, H), jnp.float32),
                 jax.ShapeDtypeStruct((L, BP, H), jnp.float32))
    out_specs = (pl.BlockSpec((BB, O), lambda b: (b, 0)),
                 pl.BlockSpec((L, BB, H), lambda b: (0, b, 0)),
                 pl.BlockSpec((L, BB, H), lambda b: (0, b, 0)))

    # Explicit VMEM budget guard (v7x: 64 MiB physical / 32 MiB default scoped).
    def _nb(shape, itemsize=4):
        return math.prod(shape) * itemsize
    block_bytes = (_nb((T, BB, D0)) + 4 * _nb((L, BB, H))
                   + _nb((BB, O)) + _nb((T * BB, H)))
    weight_bytes = sum(p["wih_t"].size * 2 + p["whh_t"].size * 2 + p["b"].size * 4
                       for p in params["lstm"])
    weight_bytes += params["fc_w_t"].size * 4 + params["fc_b"].size * 4
    interm_bytes = _nb((T * BB, 4 * H))               # per-layer xproj
    vmem_limit = int(min(100 * 2**20,
                         max(32 * 2**20,
                             4 * (block_bytes + weight_bytes + interm_bytes))))

    kernel = _make_fused_lstm_kernel(L, T, BB, H, O)
    sig, h_n, c_n = pl.pallas_call(
        kernel,
        grid=(BP // BB,),
        out_shape=out_shape,
        in_specs=in_specs,
        out_specs=out_specs,
        scratch_shapes=[pltpu.VMEM((T * BB, H), jnp.float32)],
        compiler_params=pltpu.CompilerParams(
            dimension_semantics=("parallel",),
            vmem_limit_bytes=vmem_limit),
    )(*args)

    # out.view(B, T*O)[:, -1] == sigmoid(fc(h_{T-1}))[:, O-1]
    sig_out = sig[:B, -1]                            # (B,)
    return sig_out, (h_n[:, :B, :], c_n[:, :B, :])


# ----------------------------------------------------------------------------
# Deterministic parameter init (PyTorch-style uniform(-1/sqrt(H), 1/sqrt(H)))
# ----------------------------------------------------------------------------
def init_params(key, seq_features, hidden_dim, n_layers, output_size):
    k = 1.0 / jnp.sqrt(hidden_dim)
    params = {"lstm": []}
    for layer in range(n_layers):
        d_in = seq_features if layer == 0 else hidden_dim
        key, k1, k2, k3, k4 = jax.random.split(key, 5)
        w_ih = jax.random.uniform(k1, (4 * hidden_dim, d_in), jnp.float32, -k, k)
        w_hh = jax.random.uniform(k2, (4 * hidden_dim, hidden_dim), jnp.float32, -k, k)
        b_ih = jax.random.uniform(k3, (4 * hidden_dim,), jnp.float32, -k, k)
        b_hh = jax.random.uniform(k4, (4 * hidden_dim,), jnp.float32, -k, k)
        params["lstm"].append({
            "wih_t": w_ih.T,                             # (d_in, 4H)
            "whh_t": w_hh.T,                             # (H, 4H)
            "b": (b_ih + b_hh).reshape(1, 4 * hidden_dim),
        })
    key, k5, k6 = jax.random.split(key, 3)
    kf = 1.0 / jnp.sqrt(hidden_dim)
    fc_w = jax.random.uniform(k5, (output_size, hidden_dim), jnp.float32, -kf, kf)
    fc_b = jax.random.uniform(k6, (output_size,), jnp.float32, -kf, kf)
    params["fc_w_t"] = fc_w.T                            # (H, O)
    params["fc_b"] = fc_b.reshape(1, output_size)
    return params


# ----------------------------------------------------------------------------
# Pure-JAX f32 reference (exact module semantics — correctness check)
# ----------------------------------------------------------------------------
def lstm_forward_ref(params, x, hidden):
    h0, c0 = hidden
    B, T, _ = x.shape
    H = h0.shape[-1]
    inp = x
    hs, cs = [], []
    for layer, p in enumerate(params["lstm"]):
        h, c = h0[layer], c0[layer]
        outs = []
        for t in range(T):
            gates = inp[:, t, :] @ p["wih_t"] + h @ p["whh_t"] + p["b"]
            i_g = jax.nn.sigmoid(gates[:, 0 * H:1 * H])
            f_g = jax.nn.sigmoid(gates[:, 1 * H:2 * H])
            g_g = jnp.tanh(gates[:, 2 * H:3 * H])
            o_g = jax.nn.sigmoid(gates[:, 3 * H:4 * H])
            c = f_g * c + i_g * g_g
            h = o_g * jnp.tanh(c)
            outs.append(h)
        inp = jnp.stack(outs, axis=1)
        hs.append(h)
        cs.append(c)
    lstm_out = inp.reshape(-1, H)
    out = jax.nn.sigmoid(lstm_out @ params["fc_w_t"] + params["fc_b"])
    return out.reshape(B, -1)[:, -1], (jnp.stack(hs), jnp.stack(cs))


# ----------------------------------------------------------------------------
if __name__ == "__main__":
    # small shapes consistent with the module's forward
    batch, seq_len = 2, 8
    seq_features, hidden_dim, n_layers, output_size = 16, 32, 2, 1

    key = jax.random.PRNGKey(0)
    key, kx = jax.random.split(key)
    params = init_params(key, seq_features, hidden_dim, n_layers, output_size)

    x = jax.random.normal(kx, (batch, seq_len, seq_features), jnp.float32)
    hidden = (jnp.zeros((n_layers, batch, hidden_dim), jnp.float32),
              jnp.zeros((n_layers, batch, hidden_dim), jnp.float32))

    sig_out, (h_n, c_n) = lstm_forward(params, x, hidden)
    jax.block_until_ready((sig_out, h_n, c_n))

    # correctness check vs pure-JAX f32 reference
    # (tolerance loosened: kernel uses bf16 MXU operands + tanh-based sigmoid)
    sig_ref, (h_ref, c_ref) = lstm_forward_ref(params, x, hidden)
    assert sig_out.shape == (batch,)
    assert h_n.shape == (n_layers, batch, hidden_dim)
    assert c_n.shape == (n_layers, batch, hidden_dim)
    assert jnp.allclose(sig_out, sig_ref, atol=5e-2)
    assert jnp.allclose(h_n, h_ref, atol=5e-2)
    assert jnp.allclose(c_n, c_ref, atol=5e-2)

    print("KERNEL_OK")
</pallas_src>

<mosaic_0001>
module attributes {stable_mosaic.version = 11 : i64} {
  func.func @kernel(%arg0: i32, %arg1: memref<8x8x16xf32, #tpu.memory_space<vmem>>, %arg2: memref<2x8x32xf32, #tpu.memory_space<vmem>>, %arg3: memref<2x8x32xf32, #tpu.memory_space<vmem>>, %arg4: memref<16x128xbf16, #tpu.memory_space<vmem>>, %arg5: memref<32x128xbf16, #tpu.memory_space<vmem>>, %arg6: memref<1x128xf32, #tpu.memory_space<vmem>>, %arg7: memref<32x128xbf16, #tpu.memory_space<vmem>>, %arg8: memref<32x128xbf16, #tpu.memory_space<vmem>>, %arg9: memref<1x128xf32, #tpu.memory_space<vmem>>, %arg10: memref<32x1xf32, #tpu.memory_space<vmem>>, %arg11: memref<1x1xf32, #tpu.memory_space<vmem>>, %arg12: memref<8x1xf32, #tpu.memory_space<vmem>>, %arg13: memref<2x8x32xf32, #tpu.memory_space<vmem>>, %arg14: memref<2x8x32xf32, #tpu.memory_space<vmem>>, %arg15: memref<64x32xf32, #tpu.memory_space<vmem>>) attributes {dimension_semantics = [#tpu.dimension_semantics<parallel>], iteration_bounds = array<i64: 1>, scalar_prefetch = 0 : i64, scratch_operands = 1 : i64, tpu.core_type = #tpu.core_type<tc>, window_params = [{transform_indices = @transform_0, window_bounds = array<i64: 8, 8, 16>}, {transform_indices = @transform_1, window_bounds = array<i64: 2, 8, 32>}, {transform_indices = @transform_2, window_bounds = array<i64: 2, 8, 32>}, {pipeline_mode = #tpu.pipeline_mode<synchronous>, transform_indices = @transform_3, window_bounds = array<i64: 16, 128>}, {pipeline_mode = #tpu.pipeline_mode<synchronous>, transform_indices = @transform_4, window_bounds = array<i64: 32, 128>}, {pipeline_mode = #tpu.pipeline_mode<synchronous>, transform_indices = @transform_5, window_bounds = array<i64: 1, 128>}, {pipeline_mode = #tpu.pipeline_mode<synchronous>, transform_indices = @transform_6, window_bounds = array<i64: 32, 128>}, {pipeline_mode = #tpu.pipeline_mode<synchronous>, transform_indices = @transform_7, window_bounds = array<i64: 32, 128>}, {pipeline_mode = #tpu.pipeline_mode<synchronous>, transform_indices = @transform_8, window_bounds = array<i64: 1, 128>}, {pipeline_mode = #tpu.pipeline_mode<synchronous>, transform_indices = @transform_9, window_bounds = array<i64: 32, 1>}, {pipeline_mode = #tpu.pipeline_mode<synchronous>, transform_indices = @transform_10, window_bounds = array<i64: 1, 1>}, {transform_indices = @transform_11, window_bounds = array<i64: 8, 1>}, {transform_indices = @transform_12, window_bounds = array<i64: 2, 8, 32>}, {transform_indices = @transform_13, window_bounds = array<i64: 2, 8, 32>}]} {
    %c0 = arith.constant 0 : index
    %c0_0 = arith.constant 0 : index
    %c0_1 = arith.constant 0 : index
    %0 = vector.load %arg1[%c0, %c0_0, %c0_1] : memref<8x8x16xf32, #tpu.memory_space<vmem>>, vector<8x8x16xf32>
    %1 = vector.shape_cast %0 : vector<8x8x16xf32> to vector<64x16xf32>
    %2 = arith.truncf %1 : vector<64x16xf32> to vector<64x16xbf16>
    %c0_2 = arith.constant 0 : index
    %c0_3 = arith.constant 0 : index
    %3 = vector.load %arg4[%c0_2, %c0_3] : memref<16x128xbf16, #tpu.memory_space<vmem>>, vector<16x128xbf16>
    %cst = arith.constant dense<0.000000e+00> : vector<64x128xf32>
    %4 = tpu.matmul %2, %3, %cst {dimension_numbers = #tpu.dot_dimension_numbers<[1], [0], [0], [1], [0, 0, 1, 1], [], []>} : vector<64x16xbf16>, vector<16x128xbf16>, vector<64x128xf32> -> vector<64x128xf32>
    %c0_4 = arith.constant 0 : index
    %c0_5 = arith.constant 0 : index
    %5 = vector.load %arg6[%c0_4, %c0_5] : memref<1x128xf32, #tpu.memory_space<vmem>>, vector<1x128xf32>
    %6 = vector.broadcast %5 : vector<1x128xf32> to vector<64x128xf32>
    %7 = arith.addf %4, %6 : vector<64x128xf32>
    %c0_6 = arith.constant 0 : index
    %c0_7 = arith.constant 0 : index
    %8 = vector.load %arg5[%c0_6, %c0_7] : memref<32x128xbf16, #tpu.memory_space<vmem>>, vector<32x128xbf16>
    %c0_8 = arith.constant 0 : index
    %c0_9 = arith.constant 0 : index
    %c0_10 = arith.constant 0 : index
    %9 = vector.load %arg2[%c0_8, %c0_9, %c0_10] : memref<2x8x32xf32, #tpu.memory_space<vmem>>, vector<1x8x32xf32>
    %10 = vector.shape_cast %9 : vector<1x8x32xf32> to vector<8x32xf32>
    %c0_11 = arith.constant 0 : index
    %c0_12 = arith.constant 0 : index
    %c0_13 = arith.constant 0 : index
    %11 = vector.load %arg3[%c0_11, %c0_12, %c0_13] : memref<2x8x32xf32, #tpu.memory_space<vmem>>, vector<1x8x32xf32>
    %12 = vector.shape_cast %11 : vector<1x8x32xf32> to vector<8x32xf32>
    %13 = vector.extract_strided_slice %7 {offsets = [0, 0], sizes = [8, 128], strides = [1, 1]} : vector<64x128xf32> to vector<8x128xf32>
    %14 = arith.truncf %10 : vector<8x32xf32> to vector<8x32xbf16>
    %cst_14 = arith.constant dense<0.000000e+00> : vector<8x128xf32>
    %15 = tpu.matmul %14, %8, %cst_14 {dimension_numbers = #tpu.dot_dimension_numbers<[1], [0], [0], [1], [0, 0, 1, 1], [], []>} : vector<8x32xbf16>, vector<32x128xbf16>, vector<8x128xf32> -> vector<8x128xf32>
    %16 = arith.addf %13, %15 : vector<8x128xf32>
    %17 = math.tanh %16 : vector<8x128xf32>
    %18 = vector.extract_strided_slice %17 {offsets = [0, 0], sizes = [8, 32], strides = [1, 1]} : vector<8x128xf32> to vector<8x32xf32>
    %cst_15 = arith.constant 5.000000e-01 : f32
    %19 = vector.broadcast %cst_15 : f32 to vector<8x32xf32>
    %20 = arith.mulf %19, %18 : vector<8x32xf32>
    %cst_16 = arith.constant 5.000000e-01 : f32
    %21 = vector.broadcast %cst_16 : f32 to vector<8x32xf32>
    %22 = arith.addf %20, %21 : vector<8x32xf32>
    %23 = vector.extract_strided_slice %17 {offsets = [0, 32], sizes = [8, 32], strides = [1, 1]} : vector<8x128xf32> to vector<8x32xf32>
    %cst_17 = arith.constant 5.000000e-01 : f32
    %24 = vector.broadcast %cst_17 : f32 to vector<8x32xf32>
    %25 = arith.mulf %24, %23 : vector<8x32xf32>
    %cst_18 = arith.constant 5.000000e-01 : f32
    %26 = vector.broadcast %cst_18 : f32 to vector<8x32xf32>
    %27 = arith.addf %25, %26 : vector<8x32xf32>
    %28 = vector.extract_strided_slice %17 {offsets = [0, 64], sizes = [8, 32], strides = [1, 1]} : vector<8x128xf32> to vector<8x32xf32>
    %29 = vector.extract_strided_slice %17 {offsets = [0, 96], sizes = [8, 32], strides = [1, 1]} : vector<8x128xf32> to vector<8x32xf32>
    %cst_19 = arith.constant 5.000000e-01 : f32
    %30 = vector.broadcast %cst_19 : f32 to vector<8x32xf32>
    %31 = arith.mulf %30, %29 : vector<8x32xf32>
    %cst_20 = arith.constant 5.000000e-01 : f32
    %32 = vector.broadcast %cst_20 : f32 to vector<8x32xf32>
    %33 = arith.addf %31, %32 : vector<8x32xf32>
    %34 = arith.mulf %27, %12 : vector<8x32xf32>
    %35 = arith.mulf %22, %28 : vector<8x32xf32>
    %36 = arith.addf %34, %35 : vector<8x32xf32>
    %37 = math.tanh %36 : vector<8x32xf32>
    %38 = arith.mulf %33, %37 : vector<8x32xf32>
    %c0_21 = arith.constant 0 : index
    %c0_22 = arith.constant 0 : index
    %39 = vector.load %arg15[%c0_21, %c0_22] : memref<64x32xf32, #tpu.memory_space<vmem>>, vector<8x32xf32>
    tpu.vector_store %arg15[%c0_21, %c0_22], %38 {strides = array<i32>} : memref<64x32xf32, #tpu.memory_space<vmem>>, vector<8x32xf32>,
    %40 = vector.extract_strided_slice %7 {offsets = [8, 0], sizes = [8, 128], strides = [1, 1]} : vector<64x128xf32> to vector<8x128xf32>
    %41 = arith.truncf %38 : vector<8x32xf32> to vector<8x32xbf16>
    %cst_23 = arith.constant dense<0.000000e+00> : vector<8x128xf32>
    %42 = tpu.matmul %41, %8, %cst_23 {dimension_numbers = #tpu.dot_dimension_numbers<[1], [0], [0], [1], [0, 0, 1, 1], [], []>} : vector<8x32xbf16>, vector<32x128xbf16>, vector<8x128xf32> -> vector<8x128xf32>
    %43 = arith.addf %40, %42 : vector<8x128xf32>
    %44 = math.tanh %43 : vector<8x128xf32>
    %45 = vector.extract_strided_slice %44 {offsets = [0, 0], sizes = [8, 32], strides = [1, 1]} : vector<8x128xf32> to vector<8x32xf32>
    %cst_24 = arith.constant 5.000000e-01 : f32
    %46 = vector.broadcast %cst_24 : f32 to vector<8x32xf32>
    %47 = arith.mulf %46, %45 : vector<8x32xf32>
    %cst_25 = arith.constant 5.000000e-01 : f32
    %48 = vector.broadcast %cst_25 : f32 to vector<8x32xf32>
    %49 = arith.addf %47, %48 : vector<8x32xf32>
    %50 = vector.extract_strided_slice %44 {offsets = [0, 32], sizes = [8, 32], strides = [1, 1]} : vector<8x128xf32> to vector<8x32xf32>
    %cst_26 = arith.constant 5.000000e-01 : f32
    %51 = vector.broadcast %cst_26 : f32 to vector<8x32xf32>
    %52 = arith.mulf %51, %50 : vector<8x32xf32>
    %cst_27 = arith.constant 5.000000e-01 : f32
    %53 = vector.broadcast %cst_27 : f32 to vector<8x32xf32>
    %54 = arith.addf %52, %53 : vector<8x32xf32>
    %55 = vector.extract_strided_slice %44 {offsets = [0, 64], sizes = [8, 32], strides = [1, 1]} : vector<8x128xf32> to vector<8x32xf32>
    %56 = vector.extract_strided_slice %44 {offsets = [0, 96], sizes = [8, 32], strides = [1, 1]} : vector<8x128xf32> to vector<8x32xf32>
    %cst_28 = arith.constant 5.000000e-01 : f32
    %57 = vector.broadcast %cst_28 : f32 to vector<8x32xf32>
    %58 = arith.mulf %57, %56 : vector<8x32xf32>
    %cst_29 = arith.constant 5.000000e-01 : f32
    %59 = vector.broadcast %cst_29 : f32 to vector<8x32xf32>
    %60 = arith.addf %58, %59 : vector<8x32xf32>
    %61 = arith.mulf %54, %36 : vector<8x32xf32>
    %62 = arith.mulf %49, %55 : vector<8x32xf32>
    %63 = arith.addf %61, %62 : vector<8x32xf32>
    %64 = math.tanh %63 : vector<8x32xf32>
    %65 = arith.mulf %60, %64 : vector<8x32xf32>
    %c8 = arith.constant 8 : index
    %c0_30 = arith.constant 0 : index
    %66 = vector.load %arg15[%c8, %c0_30] : memref<64x32xf32, #tpu.memory_space<vmem>>, vector<8x32xf32>
    tpu.vector_store %arg15[%c8, %c0_30], %65 {strides = array<i32>} : memref<64x32xf32, #tpu.memory_space<vmem>>, vector<8x32xf32>,
    %67 = vector.extract_strided_slice %7 {offsets = [16, 0], sizes = [8, 128], strides = [1, 1]} : vector<64x128xf32> to vector<8x128xf32>
    %68 = arith.truncf %65 : vector<8x32xf32> to vector<8x32xbf16>
    %cst_31 = arith.constant dense<0.000000e+00> : vector<8x128xf32>
    %69 = tpu.matmul %68, %8, %cst_31 {dimension_numbers = #tpu.dot_dimension_numbers<[1], [0], [0], [1], [0, 0, 1, 1], [], []>} : vector<8x32xbf16>, vector<32x128xbf16>, vector<8x128xf32> -> vector<8x128xf32>
    %70 = arith.addf %67, %69 : vector<8x128xf32>
    %71 = math.tanh %70 : vector<8x128xf32>
    %72 = vector.extract_strided_slice %71 {offsets = [0, 0], sizes = [8, 32], strides = [1, 1]} : vector<8x128xf32> to vector<8x32xf32>
    %cst_32 = arith.constant 5.000000e-01 : f32
    %73 = vector.broadcast %cst_32 : f32 to vector<8x32xf32>
    %74 = arith.mulf %73, %72 : vector<8x32xf32>
    %cst_33 = arith.constant 5.000000e-01 : f32
    %75 = vector.broadcast %cst_33 : f32 to vector<8x32xf32>
    %76 = arith.addf %74, %75 : vector<8x32xf32>
    %77 = vector.extract_strided_slice %71 {offsets = [0, 32], sizes = [8, 32], strides = [1, 1]} : vector<8x128xf32> to vector<8x32xf32>
    %cst_34 = arith.constant 5.000000e-01 : f32
    %78 = vector.broadcast %cst_34 : f32 to vector<8x32xf32>
    %79 = arith.mulf %78, %77 : vector<8x32xf32>
    %cst_35 = arith.constant 5.000000e-01 : f32
    %80 = vector.broadcast %cst_35 : f32 to vector<8x32xf32>
    %81 = arith.addf %79, %80 : vector<8x32xf32>
    %82 = vector.extract_strided_slice %71 {offsets = [0, 64], sizes = [8, 32], strides = [1, 1]} : vector<8x128xf32> to vector<8x32xf32>
    %83 = vector.extract_strided_slice %71 {offsets = [0, 96], sizes = [8, 32], strides = [1, 1]} : vector<8x128xf32> to vector<8x32xf32>
    %cst_36 = arith.constant 5.000000e-01 : f32
    %84 = vector.broadcast %cst_36 : f32 to vector<8x32xf32>
    %85 = arith.mulf %84, %83 : vector<8x32xf32>
    %cst_37 = arith.constant 5.000000e-01 : f32
    %86 = vector.broadcast %cst_37 : f32 to vector<8x32xf32>
    %87 = arith.addf %85, %86 : vector<8x32xf32>
    %88 = arith.mulf %81, %63 : vector<8x32xf32>
    %89 = arith.mulf %76, %82 : vector<8x32xf32>
    %90 = arith.addf %88, %89 : vector<8x32xf32>
    %91 = math.tanh %90 : vector<8x32xf32>
    %92 = arith.mulf %87, %91 : vector<8x32xf32>
    %c16 = arith.constant 16 : index
    %c0_38 = arith.constant 0 : index
    %93 = vector.load %arg15[%c16, %c0_38] : memref<64x32xf32, #tpu.memory_space<vmem>>, vector<8x32xf32>
    tpu.vector_store %arg15[%c16, %c0_38], %92 {strides = array<i32>} : memref<64x32xf32, #tpu.memory_space<vmem>>, vector<8x32xf32>,
    %94 = vector.extract_strided_slice %7 {offsets = [24, 0], sizes = [8, 128], strides = [1, 1]} : vector<64x128xf32> to vector<8x128xf32>
    %95 = arith.truncf %92 : vector<8x32xf32> to vector<8x32xbf16>
    %cst_39 = arith.constant dense<0.000000e+00> : vector<8x128xf32>
    %96 = tpu.matmul %95, %8, %cst_39 {dimension_numbers = #tpu.dot_dimension_numbers<[1], [0], [0], [1], [0, 0, 1, 1], [], []>} : vector<8x32xbf16>, vector<32x128xbf16>, vector<8x128xf32> -> vector<8x128xf32>
    %97 = arith.addf %94, %96 : vector<8x128xf32>
    %98 = math.tanh %97 : vector<8x128xf32>
    %99 = vector.extract_strided_slice %98 {offsets = [0, 0], sizes = [8, 32], strides = [1, 1]} : vector<8x128xf32> to vector<8x32xf32>
    %cst_40 = arith.constant 5.000000e-01 : f32
    %100 = vector.broadcast %cst_40 : f32 to vector<8x32xf32>
    %101 = arith.mulf %100, %99 : vector<8x32xf32>
    %cst_41 = arith.constant 5.000000e-01 : f32
    %102 = vector.broadcast %cst_41 : f32 to vector<8x32xf32>
    %103 = arith.addf %101, %102 : vector<8x32xf32>
    %104 = vector.extract_strided_slice %98 {offsets = [0, 32], sizes = [8, 32], strides = [1, 1]} : vector<8x128xf32> to vector<8x32xf32>
    %cst_42 = arith.constant 5.000000e-01 : f32
    %105 = vector.broadcast %cst_42 : f32 to vector<8x32xf32>
    %106 = arith.mulf %105, %104 : vector<8x32xf32>
    %cst_43 = arith.constant 5.000000e-01 : f32
    %107 = vector.broadcast %cst_43 : f32 to vector<8x32xf32>
    %108 = arith.addf %106, %107 : vector<8x32xf32>
    %109 = vector.extract_strided_slice %98 {offsets = [0, 64], sizes = [8, 32], strides = [1, 1]} : vector<8x128xf32> to vector<8x32xf32>
    %110 = vector.extract_strided_slice %98 {offsets = [0, 96], sizes = [8, 32], strides = [1, 1]} : vector<8x128xf32> to vector<8x32xf32>
    %cst_44 = arith.constant 5.000000e-01 : f32
    %111 = vector.broadcast %cst_44 : f32 to vector<8x32xf32>
    %112 = arith.mulf %111, %110 : vector<8x32xf32>
    %cst_45 = arith.constant 5.000000e-01 : f32
    %113 = vector.broadcast %cst_45 : f32 to vector<8x32xf32>
    %114 = arith.addf %112, %113 : vector<8x32xf32>
    %115 = arith.mulf %108, %90 : vector<8x32xf32>
    %116 = arith.mulf %103, %109 : vector<8x32xf32>
    %117 = arith.addf %115, %116 : vector<8x32xf32>
    %118 = math.tanh %117 : vector<8x32xf32>
    %119 = arith.mulf %114, %118 : vector<8x32xf32>
    %c24 = arith.constant 24 : index
    %c0_46 = arith.constant 0 : index
    %120 = vector.load %arg15[%c24, %c0_46] : memref<64x32xf32, #tpu.memory_space<vmem>>, vector<8x32xf32>
    tpu.vector_store %arg15[%c24, %c0_46], %119 {strides = array<i32>} : memref<64x32xf32, #tpu.memory_space<vmem>>, vector<8x32xf32>,
    %121 = vector.extract_strided_slice %7 {offsets = [32, 0], sizes = [8, 128], strides = [1, 1]} : vector<64x128xf32> to vector<8x128xf32>
    %122 = arith.truncf %119 : vector<8x32xf32> to vector<8x32xbf16>
    %cst_47 = arith.constant dense<0.000000e+00> : vector<8x128xf32>
    %123 = tpu.matmul %122, %8, %cst_47 {dimension_numbers = #tpu.dot_dimension_numbers<[1], [0], [0], [1], [0, 0, 1, 1], [], []>} : vector<8x32xbf16>, vector<32x128xbf16>, vector<8x128xf32> -> vector<8x128xf32>
    %124 = arith.addf %121, %123 : vector<8x128xf32>
    %125 = math.tanh %124 : vector<8x128xf32>
    %126 = vector.extract_strided_slice %125 {offsets = [0, 0], sizes = [8, 32], strides = [1, 1]} : vector<8x128xf32> to vector<8x32xf32>
    %cst_48 = arith.constant 5.000000e-01 : f32
    %127 = vector.broadcast %cst_48 : f32 to vector<8x32xf32>
    %128 = arith.mulf %127, %126 : vector<8x32xf32>
    %cst_49 = arith.constant 5.000000e-01 : f32
    %129 = vector.broadcast %cst_49 : f32 to vector<8x32xf32>
    %130 = arith.addf %128, %129 : vector<8x32xf32>
    %131 = vector.extract_strided_slice %125 {offsets = [0, 32], sizes = [8, 32], strides = [1, 1]} : vector<8x128xf32> to vector<8x32xf32>
    %cst_50 = arith.constant 5.000000e-01 : f32
    %132 = vector.broadcast %cst_50 : f32 to vector<8x32xf32>
    %133 = arith.mulf %132, %131 : vector<8x32xf32>
    %cst_51 = arith.constant 5.000000e-01 : f32
    %134 = vector.broadcast %cst_51 : f32 to vector<8x32xf32>
    %135 = arith.addf %133, %134 : vector<8x32xf32>
    %136 = vector.extract_strided_slice %125 {offsets = [0, 64], sizes = [8, 32], strides = [1, 1]} : vector<8x128xf32> to vector<8x32xf32>
    %137 = vector.extract_strided_slice %125 {offsets = [0, 96], sizes = [8, 32], strides = [1, 1]} : vector<8x128xf32> to vector<8x32xf32>
    %cst_52 = arith.constant 5.000000e-01 : f32
    %138 = vector.broadcast %cst_52 : f32 to vector<8x32xf32>
    %139 = arith.mulf %138, %137 : vector<8x32xf32>
    %cst_53 = arith.constant 5.000000e-01 : f32
    %140 = vector.broadcast %cst_53 : f32 to vector<8x32xf32>
    %141 = arith.addf %139, %140 : vector<8x32xf32>
    %142 = arith.mulf %135, %117 : vector<8x32xf32>
    %143 = arith.mulf %130, %136 : vector<8x32xf32>
    %144 = arith.addf %142, %143 : vector<8x32xf32>
    %145 = math.tanh %144 : vector<8x32xf32>
    %146 = arith.mulf %141, %145 : vector<8x32xf32>
    %c32 = arith.constant 32 : index
    %c0_54 = arith.constant 0 : index
    %147 = vector.load %arg15[%c32, %c0_54] : memref<64x32xf32, #tpu.memory_space<vmem>>, vector<8x32xf32>
    tpu.vector_store %arg15[%c32, %c0_54], %146 {strides = array<i32>} : memref<64x32xf32, #tpu.memory_space<vmem>>, vector<8x32xf32>,
    %148 = vector.extract_strided_slice %7 {offsets = [40, 0], sizes = [8, 128], strides = [1, 1]} : vector<64x128xf32> to vector<8x128xf32>
    %149 = arith.truncf %146 : vector<8x32xf32> to vector<8x32xbf16>
    %cst_55 = arith.constant dense<0.000000e+00> : vector<8x128xf32>
    %150 = tpu.matmul %149, %8, %cst_55 {dimension_numbers = #tpu.dot_dimension_numbers<[1], [0], [0], [1], [0, 0, 1, 1], [], []>} : vector<8x32xbf16>, vector<32x128xbf16>, vector<8x128xf32> -> vector<8x128xf32>
    %151 = arith.addf %148, %150 : vector<8x128xf32>
    %152 = math.tanh %151 : vector<8x128xf32>
    %153 = vector.extract_strided_slice %152 {offsets = [0, 0], sizes = [8, 32], strides = [1, 1]} : vector<8x128xf32> to vector<8x32xf32>
    %cst_56 = arith.constant 5.000000e-01 : f32
    %154 = vector.broadcast %cst_56 : f32 to vector<8x32xf32>
    %155 = arith.mulf %154, %153 : vector<8x32xf32>
    %cst_57 = arith.constant 5.000000e-01 : f32
    %156 = vector.broadcast %cst_57 : f32 to vector<8x32xf32>
    %157 = arith.addf %155, %156 : vector<8x32xf32>
    %158 = vector.extract_strided_slice %152 {offsets = [0, 32], sizes = [8, 32], strides = [1, 1]} : vector<8x128xf32> to vector<8x32xf32>
    %cst_58 = arith.constant 5.000000e-01 : f32
    %159 = vector.broadcast %cst_58 : f32 to vector<8x32xf32>
    %160 = arith.mulf %159, %158 : vector<8x32xf32>
    %cst_59 = arith.constant 5.000000e-01 : f32
    %161 = vector.broadcast %cst_59 : f32 to vector<8x32xf32>
    %162 = arith.addf %160, %161 : vector<8x32xf32>
    %163 = vector.extract_strided_slice %152 {offsets = [0, 64], sizes = [8, 32], strides = [1, 1]} : vector<8x128xf32> to vector<8x32xf32>
    %164 = vector.extract_strided_slice %152 {offsets = [0, 96], sizes = [8, 32], strides = [1, 1]} : vector<8x128xf32> to vector<8x32xf32>
    %cst_60 = arith.constant 5.000000e-01 : f32
    %165 = vector.broadcast %cst_60 : f32 to vector<8x32xf32>
    %166 = arith.mulf %165, %164 : vector<8x32xf32>
    %cst_61 = arith.constant 5.000000e-01 : f32
    %167 = vector.broadcast %cst_61 : f32 to vector<8x32xf32>
    %168 = arith.addf %166, %167 : vector<8x32xf32>
    %169 = arith.mulf %162, %144 : vector<8x32xf32>
    %170 = arith.mulf %157, %163 : vector<8x32xf32>
    %171 = arith.addf %169, %170 : vector<8x32xf32>
    %172 = math.tanh %171 : vector<8x32xf32>
    %173 = arith.mulf %168, %172 : vector<8x32xf32>
    %c40 = arith.constant 40 : index
    %c0_62 = arith.constant 0 : index
    %174 = vector.load %arg15[%c40, %c0_62] : memref<64x32xf32, #tpu.memory_space<vmem>>, vector<8x32xf32>
    tpu.vector_store %arg15[%c40, %c0_62], %173 {strides = array<i32>} : memref<64x32xf32, #tpu.memory_space<vmem>>, vector<8x32xf32>,
    %175 = vector.extract_strided_slice %7 {offsets = [48, 0], sizes = [8, 128], strides = [1, 1]} : vector<64x128xf32> to vector<8x128xf32>
    %176 = arith.truncf %173 : vector<8x32xf32> to vector<8x32xbf16>
    %cst_63 = arith.constant dense<0.000000e+00> : vector<8x128xf32>
    %177 = tpu.matmul %176, %8, %cst_63 {dimension_numbers = #tpu.dot_dimension_numbers<[1], [0], [0], [1], [0, 0, 1, 1], [], []>} : vector<8x32xbf16>, vector<32x128xbf16>, vector<8x128xf32> -> vector<8x128xf32>
    %178 = arith.addf %175, %177 : vector<8x128xf32>
    %179 = math.tanh %178 : vector<8x128xf32>
    %180 = vector.extract_strided_slice %179 {offsets = [0, 0], sizes = [8, 32], strides = [1, 1]} : vector<8x128xf32> to vector<8x32xf32>
    %cst_64 = arith.constant 5.000000e-01 : f32
    %181 = vector.broadcast %cst_64 : f32 to vector<8x32xf32>
    %182 = arith.mulf %181, %180 : vector<8x32xf32>
    %cst_65 = arith.constant 5.000000e-01 : f32
    %183 = vector.broadcast %cst_65 : f32 to vector<8x32xf32>
    %184 = arith.addf %182, %183 : vector<8x32xf32>
    %185 = vector.extract_strided_slice %179 {offsets = [0, 32], sizes = [8, 32], strides = [1, 1]} : vector<8x128xf32> to vector<8x32xf32>
    %cst_66 = arith.constant 5.000000e-01 : f32
    %186 = vector.broadcast %cst_66 : f32 to vector<8x32xf32>
    %187 = arith.mulf %186, %185 : vector<8x32xf32>
    %cst_67 = arith.constant 5.000000e-01 : f32
    %188 = vector.broadcast %cst_67 : f32 to vector<8x32xf32>
    %189 = arith.addf %187, %188 : vector<8x32xf32>
    %190 = vector.extract_strided_slice %179 {offsets = [0, 64], sizes = [8, 32], strides = [1, 1]} : vector<8x128xf32> to vector<8x32xf32>
    %191 = vector.extract_strided_slice %179 {offsets = [0, 96], sizes = [8, 32], strides = [1, 1]} : vector<8x128xf32> to vector<8x32xf32>
    %cst_68 = arith.constant 5.000000e-01 : f32
    %192 = vector.broadcast %cst_68 : f32 to vector<8x32xf32>
    %193 = arith.mulf %192, %191 : vector<8x32xf32>
    %cst_69 = arith.constant 5.000000e-01 : f32
    %194 = vector.broadcast %cst_69 : f32 to vector<8x32xf32>
    %195 = arith.addf %193, %194 : vector<8x32xf32>
    %196 = arith.mulf %189, %171 : vector<8x32xf32>
    %197 = arith.mulf %184, %190 : vector<8x32xf32>
    %198 = arith.addf %196, %197 : vector<8x32xf32>
    %199 = math.tanh %198 : vector<8x32xf32>
    %200 = arith.mulf %195, %199 : vector<8x32xf32>
    %c48 = arith.constant 48 : index
    %c0_70 = arith.constant 0 : index
    %201 = vector.load %arg15[%c48, %c0_70] : memref<64x32xf32, #tpu.memory_space<vmem>>, vector<8x32xf32>
    tpu.vector_store %arg15[%c48, %c0_70], %200 {strides = array<i32>} : memref<64x32xf32, #tpu.memory_space<vmem>>, vector<8x32xf32>,
    %202 = vector.extract_strided_slice %7 {offsets = [56, 0], sizes = [8, 128], strides = [1, 1]} : vector<64x128xf32> to vector<8x128xf32>
    %203 = arith.truncf %200 : vector<8x32xf32> to vector<8x32xbf16>
    %cst_71 = arith.constant dense<0.000000e+00> : vector<8x128xf32>
    %204 = tpu.matmul %203, %8, %cst_71 {dimension_numbers = #tpu.dot_dimension_numbers<[1], [0], [0], [1], [0, 0, 1, 1], [], []>} : vector<8x32xbf16>, vector<32x128xbf16>, vector<8x128xf32> -> vector<8x128xf32>
    %205 = arith.addf %202, %204 : vector<8x128xf32>
    %206 = math.tanh %205 : vector<8x128xf32>
    %207 = vector.extract_strided_slice %206 {offsets = [0, 0], sizes = [8, 32], strides = [1, 1]} : vector<8x128xf32> to vector<8x32xf32>
    %cst_72 = arith.constant 5.000000e-01 : f32
    %208 = vector.broadcast %cst_72 : f32 to vector<8x32xf32>
    %209 = arith.mulf %208, %207 : vector<8x32xf32>
    %cst_73 = arith.constant 5.000000e-01 : f32
    %210 = vector.broadcast %cst_73 : f32 to vector<8x32xf32>
    %211 = arith.addf %209, %210 : vector<8x32xf32>
    %212 = vector.extract_strided_slice %206 {offsets = [0, 32], sizes = [8, 32], strides = [1, 1]} : vector<8x128xf32> to vector<8x32xf32>
    %cst_74 = arith.constant 5.000000e-01 : f32
    %213 = vector.broadcast %cst_74 : f32 to vector<8x32xf32>
    %214 = arith.mulf %213, %212 : vector<8x32xf32>
    %cst_75 = arith.constant 5.000000e-01 : f32
    %215 = vector.broadcast %cst_75 : f32 to vector<8x32xf32>
    %216 = arith.addf %214, %215 : vector<8x32xf32>
    %217 = vector.extract_strided_slice %206 {offsets = [0, 64], sizes = [8, 32], strides = [1, 1]} : vector<8x128xf32> to vector<8x32xf32>
    %218 = vector.extract_strided_slice %206 {offsets = [0, 96], sizes = [8, 32], strides = [1, 1]} : vector<8x128xf32> to vector<8x32xf32>
    %cst_76 = arith.constant 5.000000e-01 : f32
    %219 = vector.broadcast %cst_76 : f32 to vector<8x32xf32>
    %220 = arith.mulf %219, %218 : vector<8x32xf32>
    %cst_77 = arith.constant 5.000000e-01 : f32
    %221 = vector.broadcast %cst_77 : f32 to vector<8x32xf32>
    %222 = arith.addf %220, %221 : vector<8x32xf32>
    %223 = arith.mulf %216, %198 : vector<8x32xf32>
    %224 = arith.mulf %211, %217 : vector<8x32xf32>
    %225 = arith.addf %223, %224 : vector<8x32xf32>
    %226 = math.tanh %225 : vector<8x32xf32>
    %227 = arith.mulf %222, %226 : vector<8x32xf32>
    %c56 = arith.constant 56 : index
    %c0_78 = arith.constant 0 : index
    %228 = vector.load %arg15[%c56, %c0_78] : memref<64x32xf32, #tpu.memory_space<vmem>>, vector<8x32xf32>
    tpu.vector_store %arg15[%c56, %c0_78], %227 {strides = array<i32>} : memref<64x32xf32, #tpu.memory_space<vmem>>, vector<8x32xf32>,
    %c0_79 = arith.constant 0 : index
    %c0_80 = arith.constant 0 : index
    %c0_81 = arith.constant 0 : index
    %229 = vector.load %arg13[%c0_79, %c0_80, %c0_81] : memref<2x8x32xf32, #tpu.memory_space<vmem>>, vector<1x8x32xf32>
    %230 = vector.shape_cast %229 : vector<1x8x32xf32> to vector<8x32xf32>
    %231 = vector.shape_cast %227 : vector<8x32xf32> to vector<1x8x32xf32>
    tpu.vector_store %arg13[%c0_79, %c0_80, %c0_81], %231 {strides = array<i32>} : memref<2x8x32xf32, #tpu.memory_space<vmem>>, vector<1x8x32xf32>,
    %c0_82 = arith.constant 0 : index
    %c0_83 = arith.constant 0 : index
    %c0_84 = arith.constant 0 : index
    %232 = vector.load %arg14[%c0_82, %c0_83, %c0_84] : memref<2x8x32xf32, #tpu.memory_space<vmem>>, vector<1x8x32xf32>
    %233 = vector.shape_cast %232 : vector<1x8x32xf32> to vector<8x32xf32>
    %234 = vector.shape_cast %225 : vector<8x32xf32> to vector<1x8x32xf32>
    tpu.vector_store %arg14[%c0_82, %c0_83, %c0_84], %234 {strides = array<i32>} : memref<2x8x32xf32, #tpu.memory_space<vmem>>, vector<1x8x32xf32>,
    %c0_85 = arith.constant 0 : index
    %c0_86 = arith.constant 0 : index
    %235 = vector.load %arg15[%c0_85, %c0_86] : memref<64x32xf32, #tpu.memory_space<vmem>>, vector<64x32xf32>
    %236 = arith.truncf %235 : vector<64x32xf32> to vector<64x32xbf16>
    %c0_87 = arith.constant 0 : index
    %c0_88 = arith.constant 0 : index
    %237 = vector.load %arg7[%c0_87, %c0_88] : memref<32x128xbf16, #tpu.memory_space<vmem>>, vector<32x128xbf16>
    %cst_89 = arith.constant dense<0.000000e+00> : vector<64x128xf32>
    %238 = tpu.matmul %236, %237, %cst_89 {dimension_numbers = #tpu.dot_dimension_numbers<[1], [0], [0], [1], [0, 0, 1, 1], [], []>} : vector<64x32xbf16>, vector<32x128xbf16>, vector<64x128xf32> -> vector<64x128xf32>
    %c0_90 = arith.constant 0 : index
    %c0_91 = arith.constant 0 : index
    %239 = vector.load %arg9[%c0_90, %c0_91] : memref<1x128xf32, #tpu.memory_space<vmem>>, vector<1x128xf32>
    %240 = vector.broadcast %239 : vector<1x128xf32> to vector<64x128xf32>
    %241 = arith.addf %238, %240 : vector<64x128xf32>
    %c0_92 = arith.constant 0 : index
    %c0_93 = arith.constant 0 : index
    %242 = vector.load %arg8[%c0_92, %c0_93] : memref<32x128xbf16, #tpu.memory_space<vmem>>, vector<32x128xbf16>
    %c1 = arith.constant 1 : index
    %c0_94 = arith.constant 0 : index
    %c0_95 = arith.constant 0 : index
    %243 = vector.load %arg2[%c1, %c0_94, %c0_95] : memref<2x8x32xf32, #tpu.memory_space<vmem>>, vector<1x8x32xf32>
    %244 = vector.shape_cast %243 : vector<1x8x32xf32> to vector<8x32xf32>
    %c1_96 = arith.constant 1 : index
    %c0_97 = arith.constant 0 : index
    %c0_98 = arith.constant 0 : index
    %245 = vector.load %arg3[%c1_96, %c0_97, %c0_98] : memref<2x8x32xf32, #tpu.memory_space<vmem>>, vector<1x8x32xf32>
    %246 = vector.shape_cast %245 : vector<1x8x32xf32> to vector<8x32xf32>
    %247 = vector.extract_strided_slice %241 {offsets = [0, 0], sizes = [8, 128], strides = [1, 1]} : vector<64x128xf32> to vector<8x128xf32>
    %248 = arith.truncf %244 : vector<8x32xf32> to vector<8x32xbf16>
    %cst_99 = arith.constant dense<0.000000e+00> : vector<8x128xf32>
    %249 = tpu.matmul %248, %242, %cst_99 {dimension_numbers = #tpu.dot_dimension_numbers<[1], [0], [0], [1], [0, 0, 1, 1], [], []>} : vector<8x32xbf16>, vector<32x128xbf16>, vector<8x128xf32> -> vector<8x128xf32>
    %250 = arith.addf %247, %249 : vector<8x128xf32>
    %251 = math.tanh %250 : vector<8x128xf32>
    %252 = vector.extract_strided_slice %251 {offsets = [0, 0], sizes = [8, 32], strides = [1, 1]} : vector<8x128xf32> to vector<8x32xf32>
    %cst_100 = arith.constant 5.000000e-01 : f32
    %253 = vector.broadcast %cst_100 : f32 to vector<8x32xf32>
    %254 = arith.mulf %253, %252 : vector<8x32xf32>
    %cst_101 = arith.constant 5.000000e-01 : f32
    %255 = vector.broadcast %cst_101 : f32 to vector<8x32xf32>
    %256 = arith.addf %254, %255 : vector<8x32xf32>
    %257 = vector.extract_strided_slice %251 {offsets = [0, 32], sizes = [8, 32], strides = [1, 1]} : vector<8x128xf32> to vector<8x32xf32>
    %cst_102 = arith.constant 5.000000e-01 : f32
    %258 = vector.broadcast %cst_102 : f32 to vector<8x32xf32>
    %259 = arith.mulf %258, %257 : vector<8x32xf32>
    %cst_103 = arith.constant 5.000000e-01 : f32
    %260 = vector.broadcast %cst_103 : f32 to vector<8x32xf32>
    %261 = arith.addf %259, %260 : vector<8x32xf32>
    %262 = vector.extract_strided_slice %251 {offsets = [0, 64], sizes = [8, 32], strides = [1, 1]} : vector<8x128xf32> to vector<8x32xf32>
    %263 = vector.extract_strided_slice %251 {offsets = [0, 96], sizes = [8, 32], strides = [1, 1]} : vector<8x128xf32> to vector<8x32xf32>
    %cst_104 = arith.constant 5.000000e-01 : f32
    %264 = vector.broadcast %cst_104 : f32 to vector<8x32xf32>
    %265 = arith.mulf %264, %263 : vector<8x32xf32>
    %cst_105 = arith.constant 5.000000e-01 : f32
    %266 = vector.broadcast %cst_105 : f32 to vector<8x32xf32>
    %267 = arith.addf %265, %266 : vector<8x32xf32>
    %268 = arith.mulf %261, %246 : vector<8x32xf32>
    %269 = arith.mulf %256, %262 : vector<8x32xf32>
    %270 = arith.addf %268, %269 : vector<8x32xf32>
    %271 = math.tanh %270 : vector<8x32xf32>
    %272 = arith.mulf %267, %271 : vector<8x32xf32>
    %273 = vector.extract_strided_slice %241 {offsets = [8, 0], sizes = [8, 128], strides = [1, 1]} : vector<64x128xf32> to vector<8x128xf32>
    %274 = arith.truncf %272 : vector<8x32xf32> to vector<8x32xbf16>
    %cst_106 = arith.constant dense<0.000000e+00> : vector<8x128xf32>
    %275 = tpu.matmul %274, %242, %cst_106 {dimension_numbers = #tpu.dot_dimension_numbers<[1], [0], [0], [1], [0, 0, 1, 1], [], []>} : vector<8x32xbf16>, vector<32x128xbf16>, vector<8x128xf32> -> vector<8x128xf32>
    %276 = arith.addf %273, %275 : vector<8x128xf32>
    %277 = math.tanh %276 : vector<8x128xf32>
    %278 = vector.extract_strided_slice %277 {offsets = [0, 0], sizes = [8, 32], strides = [1, 1]} : vector<8x128xf32> to vector<8x32xf32>
    %cst_107 = arith.constant 5.000000e-01 : f32
    %279 = vector.broadcast %cst_107 : f32 to vector<8x32xf32>
    %280 = arith.mulf %279, %278 : vector<8x32xf32>
    %cst_108 = arith.constant 5.000000e-01 : f32
    %281 = vector.broadcast %cst_108 : f32 to vector<8x32xf32>
    %282 = arith.addf %280, %281 : vector<8x32xf32>
    %283 = vector.extract_strided_slice %277 {offsets = [0, 32], sizes = [8, 32], strides = [1, 1]} : vector<8x128xf32> to vector<8x32xf32>
    %cst_109 = arith.constant 5.000000e-01 : f32
    %284 = vector.broadcast %cst_109 : f32 to vector<8x32xf32>
    %285 = arith.mulf %284, %283 : vector<8x32xf32>
    %cst_110 = arith.constant 5.000000e-01 : f32
    %286 = vector.broadcast %cst_110 : f32 to vector<8x32xf32>
    %287 = arith.addf %285, %286 : vector<8x32xf32>
    %288 = vector.extract_strided_slice %277 {offsets = [0, 64], sizes = [8, 32], strides = [1, 1]} : vector<8x128xf32> to vector<8x32xf32>
    %289 = vector.extract_strided_slice %277 {offsets = [0, 96], sizes = [8, 32], strides = [1, 1]} : vector<8x128xf32> to vector<8x32xf32>
    %cst_111 = arith.constant 5.000000e-01 : f32
    %290 = vector.broadcast %cst_111 : f32 to vector<8x32xf32>
    %291 = arith.mulf %290, %289 : vector<8x32xf32>
    %cst_112 = arith.constant 5.000000e-01 : f32
    %292 = vector.broadcast %cst_112 : f32 to vector<8x32xf32>
    %293 = arith.addf %291, %292 : vector<8x32xf32>
    %294 = arith.mulf %287, %270 : vector<8x32xf32>
    %295 = arith.mulf %282, %288 : vector<8x32xf32>
    %296 = arith.addf %294, %295 : vector<8x32xf32>
    %297 = math.tanh %296 : vector<8x32xf32>
    %298 = arith.mulf %293, %297 : vector<8x32xf32>
    %299 = vector.extract_strided_slice %241 {offsets = [16, 0], sizes = [8, 128], strides = [1, 1]} : vector<64x128xf32> to vector<8x128xf32>
    %300 = arith.truncf %298 : vector<8x32xf32> to vector<8x32xbf16>
    %cst_113 = arith.constant dense<0.000000e+00> : vector<8x128xf32>
    %301 = tpu.matmul %300, %242, %cst_113 {dimension_numbers = #tpu.dot_dimension_numbers<[1], [0], [0], [1], [0, 0, 1, 1], [], []>} : vector<8x32xbf16>, vector<32x128xbf16>, vector<8x128xf32> -> vector<8x128xf32>
    %302 = arith.addf %299, %301 : vector<8x128xf32>
    %303 = math.tanh %302 : vector<8x128xf32>
    %304 = vector.extract_strided_slice %303 {offsets = [0, 0], sizes = [8, 32], strides = [1, 1]} : vector<8x128xf32> to vector<8x32xf32>
    %cst_114 = arith.constant 5.000000e-01 : f32
    %305 = vector.broadcast %cst_114 : f32 to vector<8x32xf32>
    %306 = arith.mulf %305, %304 : vector<8x32xf32>
    %cst_115 = arith.constant 5.000000e-01 : f32
    %307 = vector.broadcast %cst_115 : f32 to vector<8x32xf32>
    %308 = arith.addf %306, %307 : vector<8x32xf32>
    %309 = vector.extract_strided_slice %303 {offsets = [0, 32], sizes = [8, 32], strides = [1, 1]} : vector<8x128xf32> to vector<8x32xf32>
    %cst_116 = arith.constant 5.000000e-01 : f32
    %310 = vector.broadcast %cst_116 : f32 to vector<8x32xf32>
    %311 = arith.mulf %310, %309 : vector<8x32xf32>
    %cst_117 = arith.constant 5.000000e-01 : f32
    %312 = vector.broadcast %cst_117 : f32 to vector<8x32xf32>
    %313 = arith.addf %311, %312 : vector<8x32xf32>
    %314 = vector.extract_strided_slice %303 {offsets = [0, 64], sizes = [8, 32], strides = [1, 1]} : vector<8x128xf32> to vector<8x32xf32>
    %315 = vector.extract_strided_slice %303 {offsets = [0, 96], sizes = [8, 32], strides = [1, 1]} : vector<8x128xf32> to vector<8x32xf32>
    %cst_118 = arith.constant 5.000000e-01 : f32
    %316 = vector.broadcast %cst_118 : f32 to vector<8x32xf32>
    %317 = arith.mulf %316, %315 : vector<8x32xf32>
    %cst_119 = arith.constant 5.000000e-01 : f32
    %318 = vector.broadcast %cst_119 : f32 to vector<8x32xf32>
    %319 = arith.addf %317, %318 : vector<8x32xf32>
    %320 = arith.mulf %313, %296 : vector<8x32xf32>
    %321 = arith.mulf %308, %314 : vector<8x32xf32>
    %322 = arith.addf %320, %321 : vector<8x32xf32>
    %323 = math.tanh %322 : vector<8x32xf32>
    %324 = arith.mulf %319, %323 : vector<8x32xf32>
    %325 = vector.extract_strided_slice %241 {offsets = [24, 0], sizes = [8, 128], strides = [1, 1]} : vector<64x128xf32> to vector<8x128xf32>
    %326 = arith.truncf %324 : vector<8x32xf32> to vector<8x32xbf16>
    %cst_120 = arith.constant dense<0.000000e+00> : vector<8x128xf32>
    %327 = tpu.matmul %326, %242, %cst_120 {dimension_numbers = #tpu.dot_dimension_numbers<[1], [0], [0], [1], [0, 0, 1, 1], [], []>} : vector<8x32xbf16>, vector<32x128xbf16>, vector<8x128xf32> -> vector<8x128xf32>
    %328 = arith.addf %325, %327 : vector<8x128xf32>
    %329 = math.tanh %328 : vector<8x128xf32>
    %330 = vector.extract_strided_slice %329 {offsets = [0, 0], sizes = [8, 32], strides = [1, 1]} : vector<8x128xf32> to vector<8x32xf32>
    %cst_121 = arith.constant 5.000000e-01 : f32
    %331 = vector.broadcast %cst_121 : f32 to vector<8x32xf32>
    %332 = arith.mulf %331, %330 : vector<8x32xf32>
    %cst_122 = arith.constant 5.000000e-01 : f32
    %333 = vector.broadcast %cst_122 : f32 to vector<8x32xf32>
    %334 = arith.addf %332, %333 : vector<8x32xf32>
    %335 = vector.extract_strided_slice %329 {offsets = [0, 32], sizes = [8, 32], strides = [1, 1]} : vector<8x128xf32> to vector<8x32xf32>
    %cst_123 = arith.constant 5.000000e-01 : f32
    %336 = vector.broadcast %cst_123 : f32 to vector<8x32xf32>
    %337 = arith.mulf %336, %335 : vector<8x32xf32>
    %cst_124 = arith.constant 5.000000e-01 : f32
    %338 = vector.broadcast %cst_124 : f32 to vector<8x32xf32>
    %339 = arith.addf %337, %338 : vector<8x32xf32>
    %340 = vector.extract_strided_slice %329 {offsets = [0, 64], sizes = [8, 32], strides = [1, 1]} : vector<8x128xf32> to vector<8x32xf32>
    %341 = vector.extract_strided_slice %329 {offsets = [0, 96], sizes = [8, 32], strides = [1, 1]} : vector<8x128xf32> to vector<8x32xf32>
    %cst_125 = arith.constant 5.000000e-01 : f32
    %342 = vector.broadcast %cst_125 : f32 to vector<8x32xf32>
    %343 = arith.mulf %342, %341 : vector<8x32xf32>
    %cst_126 = arith.constant 5.000000e-01 : f32
    %344 = vector.broadcast %cst_126 : f32 to vector<8x32xf32>
    %345 = arith.addf %343, %344 : vector<8x32xf32>
    %346 = arith.mulf %339, %322 : vector<8x32xf32>
    %347 = arith.mulf %334, %340 : vector<8x32xf32>
    %348 = arith.addf %346, %347 : vector<8x32xf32>
    %349 = math.tanh %348 : vector<8x32xf32>
    %350 = arith.mulf %345, %349 : vector<8x32xf32>
    %351 = vector.extract_strided_slice %241 {offsets = [32, 0], sizes = [8, 128], strides = [1, 1]} : vector<64x128xf32> to vector<8x128xf32>
    %352 = arith.truncf %350 : vector<8x32xf32> to vector<8x32xbf16>
    %cst_127 = arith.constant dense<0.000000e+00> : vector<8x128xf32>
    %353 = tpu.matmul %352, %242, %cst_127 {dimension_numbers = #tpu.dot_dimension_numbers<[1], [0], [0], [1], [0, 0, 1, 1], [], []>} : vector<8x32xbf16>, vector<32x128xbf16>, vector<8x128xf32> -> vector<8x128xf32>
    %354 = arith.addf %351, %353 : vector<8x128xf32>
    %355 = math.tanh %354 : vector<8x128xf32>
    %356 = vector.extract_strided_slice %355 {offsets = [0, 0], sizes = [8, 32], strides = [1, 1]} : vector<8x128xf32> to vector<8x32xf32>
    %cst_128 = arith.constant 5.000000e-01 : f32
    %357 = vector.broadcast %cst_128 : f32 to vector<8x32xf32>
    %358 = arith.mulf %357, %356 : vector<8x32xf32>
    %cst_129 = arith.constant 5.000000e-01 : f32
    %359 = vector.broadcast %cst_129 : f32 to vector<8x32xf32>
    %360 = arith.addf %358, %359 : vector<8x32xf32>
    %361 = vector.extract_strided_slice %355 {offsets = [0, 32], sizes = [8, 32], strides = [1, 1]} : vector<8x128xf32> to vector<8x32xf32>
    %cst_130 = arith.constant 5.000000e-01 : f32
    %362 = vector.broadcast %cst_130 : f32 to vector<8x32xf32>
    %363 = arith.mulf %362, %361 : vector<8x32xf32>
    %cst_131 = arith.constant 5.000000e-01 : f32
    %364 = vector.broadcast %cst_131 : f32 to vector<8x32xf32>
    %365 = arith.addf %363, %364 : vector<8x32xf32>
    %366 = vector.extract_strided_slice %355 {offsets = [0, 64], sizes = [8, 32], strides = [1, 1]} : vector<8x128xf32> to vector<8x32xf32>
    %367 = vector.extract_strided_slice %355 {offsets = [0, 96], sizes = [8, 32], strides = [1, 1]} : vector<8x128xf32> to vector<8x32xf32>
    %cst_132 = arith.constant 5.000000e-01 : f32
    %368 = vector.broadcast %cst_132 : f32 to vector<8x32xf32>
    %369 = arith.mulf %368, %367 : vector<8x32xf32>
    %cst_133 = arith.constant 5.000000e-01 : f32
    %370 = vector.broadcast %cst_133 : f32 to vector<8x32xf32>
    %371 = arith.addf %369, %370 : vector<8x32xf32>
    %372 = arith.mulf %365, %348 : vector<8x32xf32>
    %373 = arith.mulf %360, %366 : vector<8x32xf32>
    %374 = arith.addf %372, %373 : vector<8x32xf32>
    %375 = math.tanh %374 : vector<8x32xf32>
    %376 = arith.mulf %371, %375 : vector<8x32xf32>
    %377 = vector.extract_strided_slice %241 {offsets = [40, 0], sizes = [8, 128], strides = [1, 1]} : vector<64x128xf32> to vector<8x128xf32>
    %378 = arith.truncf %376 : vector<8x32xf32> to vector<8x32xbf16>
    %cst_134 = arith.constant dense<0.000000e+00> : vector<8x128xf32>
    %379 = tpu.matmul %378, %242, %cst_134 {dimension_numbers = #tpu.dot_dimension_numbers<[1], [0], [0], [1], [0, 0, 1, 1], [], []>} : vector<8x32xbf16>, vector<32x128xbf16>, vector<8x128xf32> -> vector<8x128xf32>
    %380 = arith.addf %377, %379 : vector<8x128xf32>
    %381 = math.tanh %380 : vector<8x128xf32>
    %382 = vector.extract_strided_slice %381 {offsets = [0, 0], sizes = [8, 32], strides = [1, 1]} : vector<8x128xf32> to vector<8x32xf32>
    %cst_135 = arith.constant 5.000000e-01 : f32
    %383 = vector.broadcast %cst_135 : f32 to vector<8x32xf32>
    %384 = arith.mulf %383, %382 : vector<8x32xf32>
    %cst_136 = arith.constant 5.000000e-01 : f32
    %385 = vector.broadcast %cst_136 : f32 to vector<8x32xf32>
    %386 = arith.addf %384, %385 : vector<8x32xf32>
    %387 = vector.extract_strided_slice %381 {offsets = [0, 32], sizes = [8, 32], strides = [1, 1]} : vector<8x128xf32> to vector<8x32xf32>
    %cst_137 = arith.constant 5.000000e-01 : f32
    %388 = vector.broadcast %cst_137 : f32 to vector<8x32xf32>
    %389 = arith.mulf %388, %387 : vector<8x32xf32>
    %cst_138 = arith.constant 5.000000e-01 : f32
    %390 = vector.broadcast %cst_138 : f32 to vector<8x32xf32>
    %391 = arith.addf %389, %390 : vector<8x32xf32>
    %392 = vector.extract_strided_slice %381 {offsets = [0, 64], sizes = [8, 32], strides = [1, 1]} : vector<8x128xf32> to vector<8x32xf32>
    %393 = vector.extract_strided_slice %381 {offsets = [0, 96], sizes = [8, 32], strides = [1, 1]} : vector<8x128xf32> to vector<8x32xf32>
    %cst_139 = arith.constant 5.000000e-01 : f32
    %394 = vector.broadcast %cst_139 : f32 to vector<8x32xf32>
    %395 = arith.mulf %394, %393 : vector<8x32xf32>
    %cst_140 = arith.constant 5.000000e-01 : f32
    %396 = vector.broadcast %cst_140 : f32 to vector<8x32xf32>
    %397 = arith.addf %395, %396 : vector<8x32xf32>
    %398 = arith.mulf %391, %374 : vector<8x32xf32>
    %399 = arith.mulf %386, %392 : vector<8x32xf32>
    %400 = arith.addf %398, %399 : vector<8x32xf32>
    %401 = math.tanh %400 : vector<8x32xf32>
    %402 = arith.mulf %397, %401 : vector<8x32xf32>
    %403 = vector.extract_strided_slice %241 {offsets = [48, 0], sizes = [8, 128], strides = [1, 1]} : vector<64x128xf32> to vector<8x128xf32>
    %404 = arith.truncf %402 : vector<8x32xf32> to vector<8x32xbf16>
    %cst_141 = arith.constant dense<0.000000e+00> : vector<8x128xf32>
    %405 = tpu.matmul %404, %242, %cst_141 {dimension_numbers = #tpu.dot_dimension_numbers<[1], [0], [0], [1], [0, 0, 1, 1], [], []>} : vector<8x32xbf16>, vector<32x128xbf16>, vector<8x128xf32> -> vector<8x128xf32>
    %406 = arith.addf %403, %405 : vector<8x128xf32>
    %407 = math.tanh %406 : vector<8x128xf32>
    %408 = vector.extract_strided_slice %407 {offsets = [0, 0], sizes = [8, 32], strides = [1, 1]} : vector<8x128xf32> to vector<8x32xf32>
    %cst_142 = arith.constant 5.000000e-01 : f32
    %409 = vector.broadcast %cst_142 : f32 to vector<8x32xf32>
    %410 = arith.mulf %409, %408 : vector<8x32xf32>
    %cst_143 = arith.constant 5.000000e-01 : f32
    %411 = vector.broadcast %cst_143 : f32 to vector<8x32xf32>
    %412 = arith.addf %410, %411 : vector<8x32xf32>
    %413 = vector.extract_strided_slice %407 {offsets = [0, 32], sizes = [8, 32], strides = [1, 1]} : vector<8x128xf32> to vector<8x32xf32>
    %cst_144 = arith.constant 5.000000e-01 : f32
    %414 = vector.broadcast %cst_144 : f32 to vector<8x32xf32>
    %415 = arith.mulf %414, %413 : vector<8x32xf32>
    %cst_145 = arith.constant 5.000000e-01 : f32
    %416 = vector.broadcast %cst_145 : f32 to vector<8x32xf32>
    %417 = arith.addf %415, %416 : vector<8x32xf32>
    %418 = vector.extract_strided_slice %407 {offsets = [0, 64], sizes = [8, 32], strides = [1, 1]} : vector<8x128xf32> to vector<8x32xf32>
    %419 = vector.extract_strided_slice %407 {offsets = [0, 96], sizes = [8, 32], strides = [1, 1]} : vector<8x128xf32> to vector<8x32xf32>
    %cst_146 = arith.constant 5.000000e-01 : f32
    %420 = vector.broadcast %cst_146 : f32 to vector<8x32xf32>
    %421 = arith.mulf %420, %419 : vector<8x32xf32>
    %cst_147 = arith.constant 5.000000e-01 : f32
    %422 = vector.broadcast %cst_147 : f32 to vector<8x32xf32>
    %423 = arith.addf %421, %422 : vector<8x32xf32>
    %424 = arith.mulf %417, %400 : vector<8x32xf32>
    %425 = arith.mulf %412, %418 : vector<8x32xf32>
    %426 = arith.addf %424, %425 : vector<8x32xf32>
    %427 = math.tanh %426 : vector<8x32xf32>
    %428 = arith.mulf %423, %427 : vector<8x32xf32>
    %429 = vector.extract_strided_slice %241 {offsets = [56, 0], sizes = [8, 128], strides = [1, 1]} : vector<64x128xf32> to vector<8x128xf32>
    %430 = arith.truncf %428 : vector<8x32xf32> to vector<8x32xbf16>
    %cst_148 = arith.constant dense<0.000000e+00> : vector<8x128xf32>
    %431 = tpu.matmul %430, %242, %cst_148 {dimension_numbers = #tpu.dot_dimension_numbers<[1], [0], [0], [1], [0, 0, 1, 1], [], []>} : vector<8x32xbf16>, vector<32x128xbf16>, vector<8x128xf32> -> vector<8x128xf32>
    %432 = arith.addf %429, %431 : vector<8x128xf32>
    %433 = math.tanh %432 : vector<8x128xf32>
    %434 = vector.extract_strided_slice %433 {offsets = [0, 0], sizes = [8, 32], strides = [1, 1]} : vector<8x128xf32> to vector<8x32xf32>
    %cst_149 = arith.constant 5.000000e-01 : f32
    %435 = vector.broadcast %cst_149 : f32 to vector<8x32xf32>
    %436 = arith.mulf %435, %434 : vector<8x32xf32>
    %cst_150 = arith.constant 5.000000e-01 : f32
    %437 = vector.broadcast %cst_150 : f32 to vector<8x32xf32>
    %438 = arith.addf %436, %437 : vector<8x32xf32>
    %439 = vector.extract_strided_slice %433 {offsets = [0, 32], sizes = [8, 32], strides = [1, 1]} : vector<8x128xf32> to vector<8x32xf32>
    %cst_151 = arith.constant 5.000000e-01 : f32
    %440 = vector.broadcast %cst_151 : f32 to vector<8x32xf32>
    %441 = arith.mulf %440, %439 : vector<8x32xf32>
    %cst_152 = arith.constant 5.000000e-01 : f32
    %442 = vector.broadcast %cst_152 : f32 to vector<8x32xf32>
    %443 = arith.addf %441, %442 : vector<8x32xf32>
    %444 = vector.extract_strided_slice %433 {offsets = [0, 64], sizes = [8, 32], strides = [1, 1]} : vector<8x128xf32> to vector<8x32xf32>
    %445 = vector.extract_strided_slice %433 {offsets = [0, 96], sizes = [8, 32], strides = [1, 1]} : vector<8x128xf32> to vector<8x32xf32>
    %cst_153 = arith.constant 5.000000e-01 : f32
    %446 = vector.broadcast %cst_153 : f32 to vector<8x32xf32>
    %447 = arith.mulf %446, %445 : vector<8x32xf32>
    %cst_154 = arith.constant 5.000000e-01 : f32
    %448 = vector.broadcast %cst_154 : f32 to vector<8x32xf32>
    %449 = arith.addf %447, %448 : vector<8x32xf32>
    %450 = arith.mulf %443, %426 : vector<8x32xf32>
    %451 = arith.mulf %438, %444 : vector<8x32xf32>
    %452 = arith.addf %450, %451 : vector<8x32xf32>
    %453 = math.tanh %452 : vector<8x32xf32>
    %454 = arith.mulf %449, %453 : vector<8x32xf32>
    %c1_155 = arith.constant 1 : index
    %c0_156 = arith.constant 0 : index
    %c0_157 = arith.constant 0 : index
    %455 = vector.load %arg13[%c1_155, %c0_156, %c0_157] : memref<2x8x32xf32, #tpu.memory_space<vmem>>, vector<1x8x32xf32>
    %456 = vector.shape_cast %455 : vector<1x8x32xf32> to vector<8x32xf32>
    %457 = vector.shape_cast %454 : vector<8x32xf32> to vector<1x8x32xf32>
    tpu.vector_store %arg13[%c1_155, %c0_156, %c0_157], %457 {strides = array<i32>} : memref<2x8x32xf32, #tpu.memory_space<vmem>>, vector<1x8x32xf32>,
    %c1_158 = arith.constant 1 : index
    %c0_159 = arith.constant 0 : index
    %c0_160 = arith.constant 0 : index
    %458 = vector.load %arg14[%c1_158, %c0_159, %c0_160] : memref<2x8x32xf32, #tpu.memory_space<vmem>>, vector<1x8x32xf32>
    %459 = vector.shape_cast %458 : vector<1x8x32xf32> to vector<8x32xf32>
    %460 = vector.shape_cast %452 : vector<8x32xf32> to vector<1x8x32xf32>
    tpu.vector_store %arg14[%c1_158, %c0_159, %c0_160], %460 {strides = array<i32>} : memref<2x8x32xf32, #tpu.memory_space<vmem>>, vector<1x8x32xf32>,
    %c0_161 = arith.constant 0 : index
    %c0_162 = arith.constant 0 : index
    %461 = vector.load %arg10[%c0_161, %c0_162] : memref<32x1xf32, #tpu.memory_space<vmem>>, vector<32x1xf32>
    %cst_163 = arith.constant dense<0.000000e+00> : vector<8x1xf32>
    %462 = tpu.matmul %454, %461, %cst_163 {dimension_numbers = #tpu.dot_dimension_numbers<[1], [0], [0], [1], [0, 0, 1, 1], [], []>} : vector<8x32xf32>, vector<32x1xf32>, vector<8x1xf32> -> vector<8x1xf32>
    %c0_164 = arith.constant 0 : index
    %c0_165 = arith.constant 0 : index
    %463 = vector.load %arg11[%c0_164, %c0_165] : memref<1x1xf32, #tpu.memory_space<vmem>>, vector<1x1xf32>
    %464 = vector.broadcast %463 : vector<1x1xf32> to vector<8x1xf32>
    %465 = arith.addf %462, %464 : vector<8x1xf32>
    %466 = arith.negf %465 : vector<8x1xf32>
    %467 = math.exp %466 : vector<8x1xf32>
    %cst_166 = arith.constant 1.000000e+00 : f32
    %468 = vector.broadcast %cst_166 : f32 to vector<8x1xf32>
    %469 = arith.addf %468, %467 : vector<8x1xf32>
    %470 = arith.divf %468, %469 : vector<8x1xf32>
    %c0_167 = arith.constant 0 : index
    %c0_168 = arith.constant 0 : index
    %471 = vector.load %arg12[%c0_167, %c0_168] : memref<8x1xf32, #tpu.memory_space<vmem>>, vector<8x1xf32>
    tpu.vector_store %arg12[%c0_167, %c0_168], %470 {strides = array<i32>} : memref<8x1xf32, #tpu.memory_space<vmem>>, vector<8x1xf32>,
    return
  }
  func.func @transform_0(%arg0: i32) -> (i32, i32, i32) {
    %c0_i32 = arith.constant 0 : i32
    %c0_i32_0 = arith.constant 0 : i32
    %c0_i32_1 = arith.constant 0 : i32
    return %c0_i32, %arg0, %c0_i32_0 : i32, i32, i32
  }
  func.func @transform_1(%arg0: i32) -> (i32, i32, i32) {
    %c0_i32 = arith.constant 0 : i32
    %c0_i32_0 = arith.constant 0 : i32
    %c0_i32_1 = arith.constant 0 : i32
    return %c0_i32, %arg0, %c0_i32_0 : i32, i32, i32
  }
  func.func @transform_2(%arg0: i32) -> (i32, i32, i32) {
    %c0_i32 = arith.constant 0 : i32
    %c0_i32_0 = arith.constant 0 : i32
    %c0_i32_1 = arith.constant 0 : i32
    return %c0_i32, %arg0, %c0_i32_0 : i32, i32, i32
  }
  func.func @transform_3(%arg0: i32) -> (i32, i32) {
    %c0_i32 = arith.constant 0 : i32
    %c0_i32_0 = arith.constant 0 : i32
    %c0_i32_1 = arith.constant 0 : i32
    return %c0_i32, %c0_i32_0 : i32, i32
  }
  func.func @transform_4(%arg0: i32) -> (i32, i32) {
    %c0_i32 = arith.constant 0 : i32
    %c0_i32_0 = arith.constant 0 : i32
    %c0_i32_1 = arith.constant 0 : i32
    return %c0_i32, %c0_i32_0 : i32, i32
  }
  func.func @transform_5(%arg0: i32) -> (i32, i32) {
    %c0_i32 = arith.constant 0 : i32
    %c0_i32_0 = arith.constant 0 : i32
    %c0_i32_1 = arith.constant 0 : i32
    return %c0_i32, %c0_i32_0 : i32, i32
  }
  func.func @transform_6(%arg0: i32) -> (i32, i32) {
    %c0_i32 = arith.constant 0 : i32
    %c0_i32_0 = arith.constant 0 : i32
    %c0_i32_1 = arith.constant 0 : i32
    return %c0_i32, %c0_i32_0 : i32, i32
  }
  func.func @transform_7(%arg0: i32) -> (i32, i32) {
    %c0_i32 = arith.constant 0 : i32
    %c0_i32_0 = arith.constant 0 : i32
    %c0_i32_1 = arith.constant 0 : i32
    return %c0_i32, %c0_i32_0 : i32, i32
  }
  func.func @transform_8(%arg0: i32) -> (i32, i32) {
    %c0_i32 = arith.constant 0 : i32
    %c0_i32_0 = arith.constant 0 : i32
    %c0_i32_1 = arith.constant 0 : i32
    return %c0_i32, %c0_i32_0 : i32, i32
  }
  func.func @transform_9(%arg0: i32) -> (i32, i32) {
    %c0_i32 = arith.constant 0 : i32
    %c0_i32_0 = arith.constant 0 : i32
    %c0_i32_1 = arith.constant 0 : i32
    return %c0_i32, %c0_i32_0 : i32, i32
  }
  func.func @transform_10(%arg0: i32) -> (i32, i32) {
    %c0_i32 = arith.constant 0 : i32
    %c0_i32_0 = arith.constant 0 : i32
    %c0_i32_1 = arith.constant 0 : i32
    return %c0_i32, %c0_i32_0 : i32, i32
  }
  func.func @transform_11(%arg0: i32) -> (i32, i32) {
    %c0_i32 = arith.constant 0 : i32
    %c0_i32_0 = arith.constant 0 : i32
    return %arg0, %c0_i32 : i32, i32
  }
  func.func @transform_12(%arg0: i32) -> (i32, i32, i32) {
    %c0_i32 = arith.constant 0 : i32
    %c0_i32_0 = arith.constant 0 : i32
    %c0_i32_1 = arith.constant 0 : i32
    return %c0_i32, %arg0, %c0_i32_0 : i32, i32, i32
  }
  func.func @transform_13(%arg0: i32) -> (i32, i32, i32) {
    %c0_i32 = arith.constant 0 : i32
    %c0_i32_0 = arith.constant 0 : i32
    %c0_i32_1 = arith.constant 0 : i32
    return %c0_i32, %arg0, %c0_i32_0 : i32, i32, i32
  }
}

</mosaic_0001>

<llo_original>
// kernel: tpu_custom_call.1
$region0: #{tpu_custom_call.1}
  #allocation0 [shape = 'u32[]', space=smem, size = 0x4, offset = 0x4, fixed_abs, tag = 'smem constant byte address 0x4 - core index']
  #allocation1 [shape = 'u32[144,128]{1,0:T(1,128)}', space=vmem, size = 0x12000, scoped, tag = 'internal scratch']
  #allocation2 [shape = 'f32[64,32]{1,0:T(8,128)}', space=vmem, size = 0x8000, scoped, tag = 'scratch operand']
  #allocation3 [shape = 'f32[1,1]{1,0:T(1,128)S(1)}', space=vmem, size = 0x200, scoped, tag = 'scoped memory for tpu_custom_call.1']
  %s0 = inlined_call_operand.hbm [shape: f32[8,8,16], index: 0, kind: input, shape index: {}]
  %s1 = inlined_call_operand.vmem [shape: f32[2,8,32], index: 1, kind: input, shape index: {}]
  %s2 = inlined_call_operand.vmem [shape: f32[2,8,32], index: 2, kind: input, shape index: {}]
  %s3 = inlined_call_operand.hbm [shape: bf16[16,128], index: 3, kind: input, shape index: {}]
  %s4 = inlined_call_operand.vmem [shape: bf16[32,128], index: 4, kind: input, shape index: {}]
  %s5 = inlined_call_operand.vmem [shape: f32[1,128], index: 5, kind: input, shape index: {}]
  %s6 = inlined_call_operand.hbm [shape: bf16[32,128], index: 6, kind: input, shape index: {}]
  %s7 = inlined_call_operand.hbm [shape: bf16[32,128], index: 7, kind: input, shape index: {}]
  %s8 = inlined_call_operand.vmem [shape: f32[1,128], index: 8, kind: input, shape index: {}]
  %s9 = inlined_call_operand.vmem [shape: f32[32,1], index: 9, kind: input, shape index: {}]
  %s10 = inlined_call_operand.<no memory space> [shape: f32[1,1], index: 10, kind: input, shape index: {}]
  %s11 = inlined_call_operand.vmem [shape: f32[8,1], index: 11, kind: output, shape index: {0}]
  %s12 = inlined_call_operand.hbm [shape: f32[2,8,32], index: 12, kind: output, shape index: {1}]
  %s13 = inlined_call_operand.hbm [shape: f32[2,8,32], index: 13, kind: output, shape index: {2}]
  %14 = xla_tuple %s11, %s12, %s13
  %s15 = sld [smem:[#allocation0]]
  $region86: #{tpu_custom_call.1} parent=0
    _
  %s17 = ssub.s32 1, %s15
  %s18 = scalar_select 0, %s17, %s15
  %v19 = vstv %s10
  %20 = vst [vmem:[#allocation3] sm:$0x1] %v19
  $region1: #{tpu_custom_call.1} parent=0
    #allocation4 [shape = 'u8[32768]{0}', space=vmem, size = 0x8000, scoped, tag = 'input window, operand 0, single buffered']
    #allocation5 [shape = 's32[1]{0}', space=sflag, size = 0x4, scoped, tag = 'scoped memory for tpu_custom_call.1']
    #allocation6 [shape = 's32[1]{0}', space=sflag, size = 0x4, scoped, tag = 'scoped memory for tpu_custom_call.1']
    #allocation7 [shape = 'u8[4096]{0}', space=vmem, size = 0x1000, scoped, tag = 'input window, operand 3, single buffered']
    #allocation8 [shape = 's32[1]{0}', space=sflag, size = 0x4, scoped, tag = 'scoped memory for tpu_custom_call.1']
    #allocation9 [shape = 'u8[8192]{0}', space=vmem, size = 0x2000, scoped, tag = 'input window, operand 6, single buffered']
    #allocation10 [shape = 'u8[8192]{0}', space=vmem, size = 0x2000, scoped, tag = 'input window, operand 7, single buffered']
    #allocation11 [shape = 's32[1]{0}', space=sflag, size = 0x4, scoped, tag = 'scoped memory for tpu_custom_call.1']
    #allocation12 [shape = 'u8[8192]{0}', space=vmem, size = 0x2000, scoped, tag = 'output window, operand 1, single buffered']
    #allocation13 [shape = 'u8[8192]{0}', space=vmem, size = 0x2000, scoped, tag = 'output window, operand 2, single buffered']
    #allocation14 [shape = 's32[1]{0}', space=sflag, size = 0x4, scoped, tag = 'scoped memory for tpu_custom_call.1']
    %21 = vsyncpa [#allocation5], 0
    %22 = vsyncpa [#allocation8], 0
    %23 = vsyncpa [#allocation11], 0
    %24 = vsyncpa [#allocation6], 0
    %25 = vsyncpa [#allocation14], 0
    // Predicated region
    $region2: #{tpu_custom_call.1} parent=1 // pred_check
      _
    $region3: #{tpu_custom_call.1} parent=1 // pred_check_branch
      %27 = sbr.rel (0) target = $region5
    $region4: #{tpu_custom_call.1} parent=1 // pred_region
      %s29 = ssub.s32 1024, 1024
      %30 = vsyncadd [#allocation5], %s29
      %s31 = sshll.u32 [#allocation4], 4
      %s32 = int_to_ptr.vmem [resolvable:$true] %s31
      %37 = dma.hbm_to_vmem [thread:$0]  %s0, 1024, %s32, [#allocation5], 128, 128, 8
    $region5: #{tpu_custom_call.1} parent=1 // pred_fallthru
      _
    // Predicated region
    $region6: #{tpu_custom_call.1} parent=1 // pred_check
      _
    $region7: #{tpu_custom_call.1} parent=1 // pred_check_branch
      %39 = sbr.rel (0) target = $region9
    $region8: #{tpu_custom_call.1} parent=1 // pred_region
      _
    $region9: #{tpu_custom_call.1} parent=1 // pred_fallthru
      _
    // Predicated region
    $region10: #{tpu_custom_call.1} parent=1 // pred_check
      _
    $region11: #{tpu_custom_call.1} parent=1 // pred_check_branch
      %41 = sbr.rel (0) target = $region13
    $region12: #{tpu_custom_call.1} parent=1 // pred_region
      _
    $region13: #{tpu_custom_call.1} parent=1 // pred_fallthru
      _
    // Predicated region
    $region14: #{tpu_custom_call.1} parent=1 // pred_check
      _
    $region15: #{tpu_custom_call.1} parent=1 // pred_check_branch
      %43 = sbr.rel (0) target = $region17
    $region16: #{tpu_custom_call.1} parent=1 // pred_region
      %s45 = ssub.s32 128, 128
      %46 = vsyncadd [#allocation8], %s45
      %s47 = sshll.u32 [#allocation7], 4
      %s48 = int_to_ptr.vmem [resolvable:$true] %s47
      %53 = dma.hbm_to_vmem [thread:$0]  %s3, 128, %s48, [#allocation8], 64, 64, 4
    $region17: #{tpu_custom_call.1} parent=1 // pred_fallthru
      _
    // Predicated region
    $region18: #{tpu_custom_call.1} parent=1 // pred_check
      _
    $region19: #{tpu_custom_call.1} parent=1 // pred_check_branch
      %55 = sbr.rel (0) target = $region21
    $region20: #{tpu_custom_call.1} parent=1 // pred_region
      _
    $region21: #{tpu_custom_call.1} parent=1 // pred_fallthru
      _
    // Predicated region
    $region22: #{tpu_custom_call.1} parent=1 // pred_check
      _
    $region23: #{tpu_custom_call.1} parent=1 // pred_check_branch
      %57 = sbr.rel (0) target = $region25
    $region24: #{tpu_custom_call.1} parent=1 // pred_region
      _
    $region25: #{tpu_custom_call.1} parent=1 // pred_fallthru
      _
    // Predicated region
    $region26: #{tpu_custom_call.1} parent=1 // pred_check
      _
    $region27: #{tpu_custom_call.1} parent=1 // pred_check_branch
      %59 = sbr.rel (0) target = $region29
    $region28: #{tpu_custom_call.1} parent=1 // pred_region
      %s61 = ssub.s32 256, 256
      %62 = vsyncadd [#allocation8], %s61
      %s63 = sshll.u32 [#allocation9], 4
      %s64 = int_to_ptr.vmem [resolvable:$true] %s63
      %69 = dma.hbm_to_vmem [thread:$0]  %s6, 256, %s64, [#allocation8], 64, 64, 4
    $region29: #{tpu_custom_call.1} parent=1 // pred_fallthru
      _
    // Predicated region
    $region30: #{tpu_custom_call.1} parent=1 // pred_check
      _
    $region31: #{tpu_custom_call.1} parent=1 // pred_check_branch
      %71 = sbr.rel (0) target = $region33
    $region32: #{tpu_custom_call.1} parent=1 // pred_region
      %s73 = ssub.s32 256, 256
      %74 = vsyncadd [#allocation11], %s73
      %s75 = sshll.u32 [#allocation10], 4
      %s76 = int_to_ptr.vmem [resolvable:$true] %s75
      %81 = dma.hbm_to_vmem [thread:$0]  %s7, 256, %s76, [#allocation11], 64, 64, 4
    $region33: #{tpu_custom_call.1} parent=1 // pred_fallthru
      _
    // Predicated region
    $region34: #{tpu_custom_call.1} parent=1 // pred_check
      _
    $region35: #{tpu_custom_call.1} parent=1 // pred_check_branch
      %83 = sbr.rel (0) target = $region37
    $region36: #{tpu_custom_call.1} parent=1 // pred_region
      _
    $region37: #{tpu_custom_call.1} parent=1 // pred_fallthru
      _
    // Predicated region
    $region38: #{tpu_custom_call.1} parent=1 // pred_check
      _
    $region39: #{tpu_custom_call.1} parent=1 // pred_check_branch
      %85 = sbr.rel (0) target = $region41
    $region40: #{tpu_custom_call.1} parent=1 // pred_region
      _
    $region41: #{tpu_custom_call.1} parent=1 // pred_fallthru
      _
    // Predicated region
    $region42: #{tpu_custom_call.1} parent=1 // pred_check
      _
    $region43: #{tpu_custom_call.1} parent=1 // pred_check_branch
      %87 = sbr.rel (0) target = $region45
    $region44: #{tpu_custom_call.1} parent=1 // pred_region
      _
    $region45: #{tpu_custom_call.1} parent=1 // pred_fallthru
      _
    // Predicated region
    $region46: #{tpu_custom_call.1} parent=1 // pred_check
      _
    $region47: #{tpu_custom_call.1} parent=1 // pred_check_branch
      %89 = sbr.rel (0) target = $region49
    $region48: #{tpu_custom_call.1} parent=1 // pred_region
      %90 = dma.done [#allocation5], 1024
    $region49: #{tpu_custom_call.1} parent=1 // pred_fallthru
      _
    // Predicated region
    $region50: #{tpu_custom_call.1} parent=1 // pred_check
      _
    $region51: #{tpu_custom_call.1} parent=1 // pred_check_branch
      %92 = sbr.rel (0) target = $region53
    $region52: #{tpu_custom_call.1} parent=1 // pred_region
      %93 = dma.done [#allocation8], 128
    $region53: #{tpu_custom_call.1} parent=1 // pred_fallthru
      _
    // Predicated region
    $region54: #{tpu_custom_call.1} parent=1 // pred_check
      _
    $region55: #{tpu_custom_call.1} parent=1 // pred_check_branch
      %95 = sbr.rel (0) target = $region57
    $region56: #{tpu_custom_call.1} parent=1 // pred_region
      %96 = dma.done [#allocation8], 256
    $region57: #{tpu_custom_call.1} parent=1 // pred_fallthru
      _
    // Predicated region
    $region58: #{tpu_custom_call.1} parent=1 // pred_check
      _
    $region59: #{tpu_custom_call.1} parent=1 // pred_check_branch
      %98 = sbr.rel (0) target = $region61
    $region60: #{tpu_custom_call.1} parent=1 // pred_region
      %99 = dma.done [#allocation11], 256
    $region61: #{tpu_custom_call.1} parent=1 // pred_fallthru
      _
    %v101 = vld [vmem:[#allocation4] sm:$0xff]
    %v102 = vld [vmem:[#allocation4 + $0x8] sm:$0xff]
    %v103 = vld [vmem:[#allocation4 + $0x10] sm:$0xff]
    %v104 = vld [vmem:[#allocation4 + $0x18] sm:$0xff]
    %v105 = vld [vmem:[#allocation4 + $0x20] sm:$0xff]
    %v106 = vld [vmem:[#allocation4 + $0x28] sm:$0xff]
    %v107 = vld [vmem:[#allocation4 + $0x30] sm:$0xff]
    %v108 = vld [vmem:[#allocation4 + $0x38] sm:$0xff]
    %v109 = vpack.c.bf16 %v102, %v101
    %v110 = vpack.c.bf16 %v104, %v103
    %v111 = vpack.c.bf16 %v106, %v105
    %v112 = vpack.c.bf16 %v108, %v107
    %v113 = vld [vmem:[#allocation7] sm:$0xf]
    %v114 = vld [vmem:[#allocation7 + $0x4] sm:$0xf]
    %v115 = vld [vmem:[%s5] sm:$0x1]
    %v117 = vlaneseq
    %v118 = vshrl.u32 %v117, 7
    %v119 = vsub.s32 0, %v118
    %v120 = vrot.slane %v115, %v119
    %v124 = vunpack.c.l.b16 %v113
    %v125 = vunpack.c.l.b16 %v114
    %v126 = vpack.c.b16 %v125, %v124
    %vm128 = vcmask 130048
    %v130 = vsel %vm128, %v109, 0
    %v133 = vsel %vm128, %v110, 0
    %v136 = vsel %vm128, %v111, 0
    %v139 = vsel %vm128, %v112, 0
    %141 = vmatprep.subr.bf16.mxu0 0
    %142 = vmatpush1.bf16.msra.mxu0 %v126
    %143 = vmatprep.subr.bf16.mxu0 0
    %144 = vmatpush1.bf16.msra.mxu0 0
    %145 = vmatprep.subr.bf16.mxu0 0
    %146 = vmatpush1.bf16.msra.mxu0 0
    %147 = vmatprep.subr.bf16.mxu0 0
    %148 = vmatpush1.bf16.msra.mxu0 0
    %149 = vmatprep.subr.bf16.mxu0 0
    %150 = vmatpush1.bf16.msra.mxu0 0
    %151 = vmatprep.subr.bf16.mxu0 0
    %152 = vmatpush1.bf16.msra.mxu0 0
    %153 = vmatprep.subr.bf16.mxu0 0
    %154 = vmatpush1.bf16.msra.mxu0 0
    %155 = vmatprep.subr.bf16.mxu0 0
    %156 = vmatpush1.bf16.msra.mxu0 0
    %157 = vmatprep.subr.bf16.mxu0 0
    %158 = vmatpush1.bf16.msra.mxu0 0
    %159 = vmatprep.subr.bf16.mxu0 0
    %160 = vmatpush1.bf16.msra.mxu0 0
    %161 = vmatprep.subr.bf16.mxu0 0
    %162 = vmatpush1.bf16.msra.mxu0 0
    %163 = vmatprep.subr.bf16.mxu0 0
    %164 = vmatpush1.bf16.msra.mxu0 0
    %165 = vmatprep.subr.bf16.mxu0 0
    %166 = vmatpush1.bf16.msra.mxu0 0
    %167 = vmatprep.subr.bf16.mxu0 0
    %168 = vmatpush1.bf16.msra.mxu0 0
    %169 = vmatprep.subr.bf16.mxu0 0
    %170 = vmatpush1.bf16.msra.mxu0 0
    %171 = vmatprep.subr.bf16.mxu0 0
    %172 = vmatpush1.bf16.msra.mxu0 0
    %173 = vmatprep.mubr.bf16.mxu0 0
    %174 = vmatmul.mubr.bf16.gmra.mrb[0].mxu0 %v130
    %v175 = vpop.f32.mrb[0].mxu0
    %v176 = vadd.f32 %v120, %v175
    %v177 = vpop.f32.mrb[0].mxu0
    %v178 = vpop.f32.mrb[0].mxu0
    %v179 = vadd.f32 %v120, %v178
    %v180 = vpop.f32.mrb[0].mxu0
    %181 = vmatprep.mubr.bf16.mxu0 0
    %182 = vmatmul.mubr.bf16.gmra.mrb[0].mxu0 %v133
    %v183 = vpop.f32.mrb[0].mxu0
    %v184 = vadd.f32 %v120, %v183
    %v185 = vpop.f32.mrb[0].mxu0
    %v186 = vpop.f32.mrb[0].mxu0
    %v187 = vadd.f32 %v120, %v186
    %v188 = vpop.f32.mrb[0].mxu0
    %189 = vmatprep.mubr.bf16.mxu0 0
    %190 = vmatmul.mubr.bf16.gmra.mrb[0].mxu0 %v136
    %v191 = vpop.f32.mrb[0].mxu0
    %v192 = vadd.f32 %v120, %v191
    %v193 = vpop.f32.mrb[0].mxu0
    %v194 = vpop.f32.mrb[0].mxu0
    %v195 = vadd.f32 %v120, %v194
    %v196 = vpop.f32.mrb[0].mxu0
    %197 = vmatprep.mubr.bf16.mxu0 0
    %198 = vmatmul.mubr.bf16.gmra.mrb[0].mxu0 %v139
    %v199 = vpop.f32.mrb[0].mxu0
    %v200 = vadd.f32 %v120, %v199
    %v201 = vpop.f32.mrb[0].mxu0
    %v202 = vpop.f32.mrb[0].mxu0
    %v203 = vadd.f32 %v120, %v202
    %v204 = vpop.f32.mrb[0].mxu0
    %205 = vdwg.mxu0
    %v206 = vld [vmem:[%s4] sm:$0xf]
    %v207 = vld [vmem:[%s4 + $0x4] sm:$0xf]
    %v208 = vld [vmem:[%s4 + $0x8] sm:$0xf]
    %v209 = vld [vmem:[%s4 + $0xc] sm:$0xf]
    %v210 = vld [vmem:[%s1] sm:$0xff]
    %v211 = vld [vmem:[%s2] sm:$0xff]
    %v212 = vpack.c.bf16 %v210, %v210
    %v217 = vunpack.c.l.b16 %v206
    %v218 = vunpack.c.l.b16 %v207
    %v219 = vunpack.c.l.b16 %v208
    %v220 = vunpack.c.l.b16 %v209
    %v221 = vpack.c.b16 %v218, %v217
    %v222 = vpack.c.b16 %v220, %v219
    %vm225 = vcmask 261120
    %v227 = vsel %vm225, %v212, 0
    %229 = vmatprep.subr.bf16.mxu0 0
    %230 = vmatpush1.bf16.msra.mxu0 %v221
    %231 = vmatprep.subr.bf16.mxu0 0
    %232 = vmatpush1.bf16.msra.mxu0 %v222
    %233 = vmatprep.subr.bf16.mxu0 0
    %234 = vmatpush1.bf16.msra.mxu0 0
    %235 = vmatprep.subr.bf16.mxu0 0
    %236 = vmatpush1.bf16.msra.mxu0 0
    %237 = vmatprep.subr.bf16.mxu0 0
    %238 = vmatpush1.bf16.msra.mxu0 0
    %239 = vmatprep.subr.bf16.mxu0 0
    %240 = vmatpush1.bf16.msra.mxu0 0
    %241 = vmatprep.subr.bf16.mxu0 0
    %242 = vmatpush1.bf16.msra.mxu0 0
    %243 = vmatprep.subr.bf16.mxu0 0
    %244 = vmatpush1.bf16.msra.mxu0 0
    %245 = vmatprep.subr.bf16.mxu0 0
    %246 = vmatpush1.bf16.msra.mxu0 0
    %247 = vmatprep.subr.bf16.mxu0 0
    %248 = vmatpush1.bf16.msra.mxu0 0
    %249 = vmatprep.subr.bf16.mxu0 0
    %250 = vmatpush1.bf16.msra.mxu0 0
    %251 = vmatprep.subr.bf16.mxu0 0
    %252 = vmatpush1.bf16.msra.mxu0 0
    %253 = vmatprep.subr.bf16.mxu0 0
    %254 = vmatpush1.bf16.msra.mxu0 0
    %255 = vmatprep.subr.bf16.mxu0 0
    %256 = vmatpush1.bf16.msra.mxu0 0
    %257 = vmatprep.subr.bf16.mxu0 0
    %258 = vmatpush1.bf16.msra.mxu0 0
    %259 = vmatprep.subr.bf16.mxu0 0
    %260 = vmatpush1.bf16.msra.mxu0 0
    %261 = vmatprep.mubr.bf16.mxu0 0
    %262 = vmatmul.mubr.bf16.gmra.mrb[0].mxu0 %v227
    %v263 = vpop.f32.mrb[0].mxu0
    %v264 = vadd.f32 0.0, %v263
    %v265 = vpop.f32.mrb[0].mxu0
    %v266 = vpop.f32.mrb[0].mxu0
    %v267 = vpop.f32.mrb[0].mxu0
    %268 = vdwg.mxu0
    %v269 = vadd.f32 %v176, %v264
    %v270 = vtanh.pop %v269
    %v271 = vmul.f32 %v270, 0.5
    %v272 = vadd.f32 %v271, 0.5
    %274 = vrot.lane.b32.xlu0 %v211, 32
    %v275 = vpop.permute.xlu0 %274
    %v277 = vmul.f32 %v272, %v275
    %279 = vrot.lane.b32.xlu0 %v270, 64
    %v280 = vpop.permute.xlu0 %279
    %v282 = vmul.f32 %v272, %v280
    %284 = vrot.lane.b32.xlu0 %v282, 32
    %v285 = vpop.permute.xlu0 %284
    %v287 = vadd.f32 %v277, %v285
    %v288 = vtanh.pop %v287
    %290 = vrot.lane.b32.xlu0 %v288, 64
    %v291 = vpop.permute.xlu0 %290
    %v293 = vmul.f32 %v272, %v291
    %295 = vrot.lane.b32.xlu0 %v293, 32
    %v296 = vpop.permute.xlu0 %295
    %298 = vst.msk [vmem:[#allocation2] sm:$0xff] %vm225, %v296
    %v299 = vpack.c.bf16 %v293, %v293
    %301 = vrot.lane.b32.xlu0 %v299, 32
    %v302 = vpop.permute.xlu0 %301
    %v304 = vsel %vm225, %v302, 0
    %306 = vmatprep.subr.bf16.mxu0 0
    %307 = vmatpush1.bf16.msra.mxu0 %v221
    %308 = vmatprep.subr.bf16.mxu0 0
    %309 = vmatpush1.bf16.msra.mxu0 %v222
    %310 = vmatprep.subr.bf16.mxu0 0
    %311 = vmatpush1.bf16.msra.mxu0 0
    %312 = vmatprep.subr.bf16.mxu0 0
    %313 = vmatpush1.bf16.msra.mxu0 0
    %314 = vmatprep.subr.bf16.mxu0 0
    %315 = vmatpush1.bf16.msra.mxu0 0
    %316 = vmatprep.subr.bf16.mxu0 0
    %317 = vmatpush1.bf16.msra.mxu0 0
    %318 = vmatprep.subr.bf16.mxu0 0
    %319 = vmatpush1.bf16.msra.mxu0 0
    %320 = vmatprep.subr.bf16.mxu0 0
    %321 = vmatpush1.bf16.msra.mxu0 0
    %322 = vmatprep.subr.bf16.mxu0 0
    %323 = vmatpush1.bf16.msra.mxu0 0
    %324 = vmatprep.subr.bf16.mxu0 0
    %325 = vmatpush1.bf16.msra.mxu0 0
    %326 = vmatprep.subr.bf16.mxu0 0
    %327 = vmatpush1.bf16.msra.mxu0 0
    %328 = vmatprep.subr.bf16.mxu0 0
    %329 = vmatpush1.bf16.msra.mxu0 0
    %330 = vmatprep.subr.bf16.mxu0 0
    %331 = vmatpush1.bf16.msra.mxu0 0
    %332 = vmatprep.subr.bf16.mxu0 0
    %333 = vmatpush1.bf16.msra.mxu0 0
    %334 = vmatprep.subr.bf16.mxu0 0
    %335 = vmatpush1.bf16.msra.mxu0 0
    %336 = vmatprep.subr.bf16.mxu0 0
    %337 = vmatpush1.bf16.msra.mxu0 0
    %338 = vmatprep.mubr.bf16.mxu0 0
    %339 = vmatmul.mubr.bf16.gmra.mrb[0].mxu0 %v304
    %v340 = vpop.f32.mrb[0].mxu0
    %v341 = vadd.f32 0.0, %v340
    %v342 = vpop.f32.mrb[0].mxu0
    %v343 = vpop.f32.mrb[0].mxu0
    %v344 = vpop.f32.mrb[0].mxu0
    %345 = vdwg.mxu0
    %v346 = vadd.f32 %v179, %v341
    %v347 = vtanh.pop %v346
    %v348 = vmul.f32 %v347, 0.5
    %v349 = vadd.f32 %v348, 0.5
    %v350 = vmul.f32 %v349, %v287
    %352 = vrot.lane.b32.xlu0 %v347, 64
    %v353 = vpop.permute.xlu0 %352
    %v355 = vmul.f32 %v349, %v353
    %357 = vrot.lane.b32.xlu0 %v355, 32
    %v358 = vpop.permute.xlu0 %357
    %v360 = vadd.f32 %v350, %v358
    %v361 = vtanh.pop %v360
    %363 = vrot.lane.b32.xlu0 %v361, 64
    %v364 = vpop.permute.xlu0 %363
    %v366 = vmul.f32 %v349, %v364
    %368 = vrot.lane.b32.xlu0 %v366, 32
    %v369 = vpop.permute.xlu0 %368
    %371 = vst.msk [vmem:[#allocation2 + $0x8] sm:$0xff] %vm225, %v369
    %v372 = vpack.c.bf16 %v366, %v366
    %374 = vrot.lane.b32.xlu0 %v372, 32
    %v375 = vpop.permute.xlu0 %374
    %v377 = vsel %vm225, %v375, 0
    %379 = vmatprep.subr.bf16.mxu0 0
    %380 = vmatpush1.bf16.msra.mxu0 %v221
    %381 = vmatprep.subr.bf16.mxu0 0
    %382 = vmatpush1.bf16.msra.mxu0 %v222
    %383 = vmatprep.subr.bf16.mxu0 0
    %384 = vmatpush1.bf16.msra.mxu0 0
    %385 = vmatprep.subr.bf16.mxu0 0
    %386 = vmatpush1.bf16.msra.mxu0 0
    %387 = vmatprep.subr.bf16.mxu0 0
    %388 = vmatpush1.bf16.msra.mxu0 0
    %389 = vmatprep.subr.bf16.mxu0 0
    %390 = vmatpush1.bf16.msra.mxu0 0
    %391 = vmatprep.subr.bf16.mxu0 0
    %392 = vmatpush1.bf16.msra.mxu0 0
    %393 = vmatprep.subr.bf16.mxu0 0
    %394 = vmatpush1.bf16.msra.mxu0 0
    %395 = vmatprep.subr.bf16.mxu0 0
    %396 = vmatpush1.bf16.msra.mxu0 0
    %397 = vmatprep.subr.bf16.mxu0 0
    %398 = vmatpush1.bf16.msra.mxu0 0
    %399 = vmatprep.subr.bf16.mxu0 0
    %400 = vmatpush1.bf16.msra.mxu0 0
    %401 = vmatprep.subr.bf16.mxu0 0
    %402 = vmatpush1.bf16.msra.mxu0 0
    %403 = vmatprep.subr.bf16.mxu0 0
    %404 = vmatpush1.bf16.msra.mxu0 0
    %405 = vmatprep.subr.bf16.mxu0 0
    %406 = vmatpush1.bf16.msra.mxu0 0
    %407 = vmatprep.subr.bf16.mxu0 0
    %408 = vmatpush1.bf16.msra.mxu0 0
    %409 = vmatprep.subr.bf16.mxu0 0
    %410 = vmatpush1.bf16.msra.mxu0 0
    %411 = vmatprep.mubr.bf16.mxu0 0
    %412 = vmatmul.mubr.bf16.gmra.mrb[0].mxu0 %v377
    %v413 = vpop.f32.mrb[0].mxu0
    %v414 = vadd.f32 0.0, %v413
    %v415 = vpop.f32.mrb[0].mxu0
    %v416 = vpop.f32.mrb[0].mxu0
    %v417 = vpop.f32.mrb[0].mxu0
    %418 = vdwg.mxu0
    %v419 = vadd.f32 %v184, %v414
    %v420 = vtanh.pop %v419
    %v421 = vmul.f32 %v420, 0.5
    %v422 = vadd.f32 %v421, 0.5
    %v423 = vmul.f32 %v422, %v360
    %425 = vrot.lane.b32.xlu0 %v420, 64
    %v426 = vpop.permute.xlu0 %425
    %v428 = vmul.f32 %v422, %v426
    %430 = vrot.lane.b32.xlu0 %v428, 32
    %v431 = vpop.permute.xlu0 %430
    %v433 = vadd.f32 %v423, %v431
    %v434 = vtanh.pop %v433
    %436 = vrot.lane.b32.xlu0 %v434, 64
    %v437 = vpop.permute.xlu0 %436
    %v439 = vmul.f32 %v422, %v437
    %441 = vrot.lane.b32.xlu0 %v439, 32
    %v442 = vpop.permute.xlu0 %441
    %444 = vst.msk [vmem:[#allocation2 + $0x10] sm:$0xff] %vm225, %v442
    %v445 = vpack.c.bf16 %v439, %v439
    %447 = vrot.lane.b32.xlu0 %v445, 32
    %v448 = vpop.permute.xlu0 %447
    %v450 = vsel %vm225, %v448, 0
    %452 = vmatprep.subr.bf16.mxu0 0
    %453 = vmatpush1.bf16.msra.mxu0 %v221
    %454 = vmatprep.subr.bf16.mxu0 0
    %455 = vmatpush1.bf16.msra.mxu0 %v222
    %456 = vmatprep.subr.bf16.mxu0 0
    %457 = vmatpush1.bf16.msra.mxu0 0
    %458 = vmatprep.subr.bf16.mxu0 0
    %459 = vmatpush1.bf16.msra.mxu0 0
    %460 = vmatprep.subr.bf16.mxu0 0
    %461 = vmatpush1.bf16.msra.mxu0 0
    %462 = vmatprep.subr.bf16.mxu0 0
    %463 = vmatpush1.bf16.msra.mxu0 0
    %464 = vmatprep.subr.bf16.mxu0 0
    %465 = vmatpush1.bf16.msra.mxu0 0
    %466 = vmatprep.subr.bf16.mxu0 0
    %467 = vmatpush1.bf16.msra.mxu0 0
    %468 = vmatprep.subr.bf16.mxu0 0
    %469 = vmatpush1.bf16.msra.mxu0 0
    %470 = vmatprep.subr.bf16.mxu0 0
    %471 = vmatpush1.bf16.msra.mxu0 0
    %472 = vmatprep.subr.bf16.mxu0 0
    %473 = vmatpush1.bf16.msra.mxu0 0
    %474 = vmatprep.subr.bf16.mxu0 0
    %475 = vmatpush1.bf16.msra.mxu0 0
    %476 = vmatprep.subr.bf16.mxu0 0
    %477 = vmatpush1.bf16.msra.mxu0 0
    %478 = vmatprep.subr.bf16.mxu0 0
    %479 = vmatpush1.bf16.msra.mxu0 0
    %480 = vmatprep.subr.bf16.mxu0 0
    %481 = vmatpush1.bf16.msra.mxu0 0
    %482 = vmatprep.subr.bf16.mxu0 0
    %483 = vmatpush1.bf16.msra.mxu0 0
    %484 = vmatprep.mubr.bf16.mxu0 0
    %485 = vmatmul.mubr.bf16.gmra.mrb[0].mxu0 %v450
    %v486 = vpop.f32.mrb[0].mxu0
    %v487 = vadd.f32 0.0, %v486
    %v488 = vpop.f32.mrb[0].mxu0
    %v489 = vpop.f32.mrb[0].mxu0
    %v490 = vpop.f32.mrb[0].mxu0
    %491 = vdwg.mxu0
    %v492 = vadd.f32 %v187, %v487
    %v493 = vtanh.pop %v492
    %v494 = vmul.f32 %v493, 0.5
    %v495 = vadd.f32 %v494, 0.5
    %v496 = vmul.f32 %v495, %v433
    %498 = vrot.lane.b32.xlu0 %v493, 64
    %v499 = vpop.permute.xlu0 %498
    %v501 = vmul.f32 %v495, %v499
    %503 = vrot.lane.b32.xlu0 %v501, 32
    %v504 = vpop.permute.xlu0 %503
    %v506 = vadd.f32 %v496, %v504
    %v507 = vtanh.pop %v506
    %509 = vrot.lane.b32.xlu0 %v507, 64
    %v510 = vpop.permute.xlu0 %509
    %v512 = vmul.f32 %v495, %v510
    %514 = vrot.lane.b32.xlu0 %v512, 32
    %v515 = vpop.permute.xlu0 %514
    %517 = vst.msk [vmem:[#allocation2 + $0x18] sm:$0xff] %vm225, %v515
    %v518 = vpack.c.bf16 %v512, %v512
    %520 = vrot.lane.b32.xlu0 %v518, 32
    %v521 = vpop.permute.xlu0 %520
    %v523 = vsel %vm225, %v521, 0
    %525 = vmatprep.subr.bf16.mxu0 0
    %526 = vmatpush1.bf16.msra.mxu0 %v221
    %527 = vmatprep.subr.bf16.mxu0 0
    %528 = vmatpush1.bf16.msra.mxu0 %v222
    %529 = vmatprep.subr.bf16.mxu0 0
    %530 = vmatpush1.bf16.msra.mxu0 0
    %531 = vmatprep.subr.bf16.mxu0 0
    %532 = vmatpush1.bf16.msra.mxu0 0
    %533 = vmatprep.subr.bf16.mxu0 0
    %534 = vmatpush1.bf16.msra.mxu0 0
    %535 = vmatprep.subr.bf16.mxu0 0
    %536 = vmatpush1.bf16.msra.mxu0 0
    %537 = vmatprep.subr.bf16.mxu0 0
    %538 = vmatpush1.bf16.msra.mxu0 0
    %539 = vmatprep.subr.bf16.mxu0 0
    %540 = vmatpush1.bf16.msra.mxu0 0
    %541 = vmatprep.subr.bf16.mxu0 0
    %542 = vmatpush1.bf16.msra.mxu0 0
    %543 = vmatprep.subr.bf16.mxu0 0
    %544 = vmatpush1.bf16.msra.mxu0 0
    %545 = vmatprep.subr.bf16.mxu0 0
    %546 = vmatpush1.bf16.msra.mxu0 0
    %547 = vmatprep.subr.bf16.mxu0 0
    %548 = vmatpush1.bf16.msra.mxu0 0
    %549 = vmatprep.subr.bf16.mxu0 0
    %550 = vmatpush1.bf16.msra.mxu0 0
    %551 = vmatprep.subr.bf16.mxu0 0
    %552 = vmatpush1.bf16.msra.mxu0 0
    %553 = vmatprep.subr.bf16.mxu0 0
    %554 = vmatpush1.bf16.msra.mxu0 0
    %555 = vmatprep.subr.bf16.mxu0 0
    %556 = vmatpush1.bf16.msra.mxu0 0
    %557 = vmatprep.mubr.bf16.mxu0 0
    %558 = vmatmul.mubr.bf16.gmra.mrb[0].mxu0 %v523
    %v559 = vpop.f32.mrb[0].mxu0
    %v560 = vadd.f32 0.0, %v559
    %v561 = vpop.f32.mrb[0].mxu0
    %v562 = vpop.f32.mrb[0].mxu0
    %v563 = vpop.f32.mrb[0].mxu0
    %564 = vdwg.mxu0
    %v565 = vadd.f32 %v192, %v560
    %v566 = vtanh.pop %v565
    %v567 = vmul.f32 %v566, 0.5
    %v568 = vadd.f32 %v567, 0.5
    %v569 = vmul.f32 %v568, %v506
    %571 = vrot.lane.b32.xlu0 %v566, 64
    %v572 = vpop.permute.xlu0 %571
    %v574 = vmul.f32 %v568, %v572
    %576 = vrot.lane.b32.xlu0 %v574, 32
    %v577 = vpop.permute.xlu0 %576
    %v579 = vadd.f32 %v569, %v577
    %v580 = vtanh.pop %v579
    %582 = vrot.lane.b32.xlu0 %v580, 64
    %v583 = vpop.permute.xlu0 %582
    %v585 = vmul.f32 %v568, %v583
    %587 = vrot.lane.b32.xlu0 %v585, 32
    %v588 = vpop.permute.xlu0 %587
    %590 = vst.msk [vmem:[#allocation2 + $0x20] sm:$0xff] %vm225, %v588
    %v591 = vpack.c.bf16 %v585, %v585
    %593 = vrot.lane.b32.xlu0 %v591, 32
    %v594 = vpop.permute.xlu0 %593
    %v596 = vsel %vm225, %v594, 0
    %598 = vmatprep.subr.bf16.mxu0 0
    %599 = vmatpush1.bf16.msra.mxu0 %v221
    %600 = vmatprep.subr.bf16.mxu0 0
    %601 = vmatpush1.bf16.msra.mxu0 %v222
    %602 = vmatprep.subr.bf16.mxu0 0
    %603 = vmatpush1.bf16.msra.mxu0 0
    %604 = vmatprep.subr.bf16.mxu0 0
    %605 = vmatpush1.bf16.msra.mxu0 0
    %606 = vmatprep.subr.bf16.mxu0 0
    %607 = vmatpush1.bf16.msra.mxu0 0
    %608 = vmatprep.subr.bf16.mxu0 0
    %609 = vmatpush1.bf16.msra.mxu0 0
    %610 = vmatprep.subr.bf16.mxu0 0
    %611 = vmatpush1.bf16.msra.mxu0 0
    %612 = vmatprep.subr.bf16.mxu0 0
    %613 = vmatpush1.bf16.msra.mxu0 0
    %614 = vmatprep.subr.bf16.mxu0 0
    %615 = vmatpush1.bf16.msra.mxu0 0
    %616 = vmatprep.subr.bf16.mxu0 0
    %617 = vmatpush1.bf16.msra.mxu0 0
    %618 = vmatprep.subr.bf16.mxu0 0
    %619 = vmatpush1.bf16.msra.mxu0 0
    %620 = vmatprep.subr.bf16.mxu0 0
    %621 = vmatpush1.bf16.msra.mxu0 0
    %622 = vmatprep.subr.bf16.mxu0 0
    %623 = vmatpush1.bf16.msra.mxu0 0
    %624 = vmatprep.subr.bf16.mxu0 0
    %625 = vmatpush1.bf16.msra.mxu0 0
    %626 = vmatprep.subr.bf16.mxu0 0
    %627 = vmatpush1.bf16.msra.mxu0 0
    %628 = vmatprep.subr.bf16.mxu0 0
    %629 = vmatpush1.bf16.msra.mxu0 0
    %630 = vmatprep.mubr.bf16.mxu0 0
    %631 = vmatmul.mubr.bf16.gmra.mrb[0].mxu0 %v596
    %v632 = vpop.f32.mrb[0].mxu0
    %v633 = vadd.f32 0.0, %v632
    %v634 = vpop.f32.mrb[0].mxu0
    %v635 = vpop.f32.mrb[0].mxu0
    %v636 = vpop.f32.mrb[0].mxu0
    %637 = vdwg.mxu0
    %v638 = vadd.f32 %v195, %v633
    %v639 = vtanh.pop %v638
    %v640 = vmul.f32 %v639, 0.5
    %v641 = vadd.f32 %v640, 0.5
    %v642 = vmul.f32 %v641, %v579
    %644 = vrot.lane.b32.xlu0 %v639, 64
    %v645 = vpop.permute.xlu0 %644
    %v647 = vmul.f32 %v641, %v645
    %649 = vrot.lane.b32.xlu0 %v647, 32
    %v650 = vpop.permute.xlu0 %649
    %v652 = vadd.f32 %v642, %v650
    %v653 = vtanh.pop %v652
    %655 = vrot.lane.b32.xlu0 %v653, 64
    %v656 = vpop.permute.xlu0 %655
    %v658 = vmul.f32 %v641, %v656
    %660 = vrot.lane.b32.xlu0 %v658, 32
    %v661 = vpop.permute.xlu0 %660
    %663 = vst.msk [vmem:[#allocation2 + $0x28] sm:$0xff] %vm225, %v661
    %v664 = vpack.c.bf16 %v658, %v658
    %666 = vrot.lane.b32.xlu0 %v664, 32
    %v667 = vpop.permute.xlu0 %666
    %v669 = vsel %vm225, %v667, 0
    %671 = vmatprep.subr.bf16.mxu0 0
    %672 = vmatpush1.bf16.msra.mxu0 %v221
    %673 = vmatprep.subr.bf16.mxu0 0
    %674 = vmatpush1.bf16.msra.mxu0 %v222
    %675 = vmatprep.subr.bf16.mxu0 0
    %676 = vmatpush1.bf16.msra.mxu0 0
    %677 = vmatprep.subr.bf16.mxu0 0
    %678 = vmatpush1.bf16.msra.mxu0 0
    %679 = vmatprep.subr.bf16.mxu0 0
    %680 = vmatpush1.bf16.msra.mxu0 0
    %681 = vmatprep.subr.bf16.mxu0 0
    %682 = vmatpush1.bf16.msra.mxu0 0
    %683 = vmatprep.subr.bf16.mxu0 0
    %684 = vmatpush1.bf16.msra.mxu0 0
    %685 = vmatprep.subr.bf16.mxu0 0
    %686 = vmatpush1.bf16.msra.mxu0 0
    %687 = vmatprep.subr.bf16.mxu0 0
    %688 = vmatpush1.bf16.msra.mxu0 0
    %689 = vmatprep.subr.bf16.mxu0 0
    %690 = vmatpush1.bf16.msra.mxu0 0
    %691 = vmatprep.subr.bf16.mxu0 0
    %692 = vmatpush1.bf16.msra.mxu0 0
    %693 = vmatprep.subr.bf16.mxu0 0
    %694 = vmatpush1.bf16.msra.mxu0 0
    %695 = vmatprep.subr.bf16.mxu0 0
    %696 = vmatpush1.bf16.msra.mxu0 0
    %697 = vmatprep.subr.bf16.mxu0 0
    %698 = vmatpush1.bf16.msra.mxu0 0
    %699 = vmatprep.subr.bf16.mxu0 0
    %700 = vmatpush1.bf16.msra.mxu0 0
    %701 = vmatprep.subr.bf16.mxu0 0
    %702 = vmatpush1.bf16.msra.mxu0 0
    %703 = vmatprep.mubr.bf16.mxu0 0
    %704 = vmatmul.mubr.bf16.gmra.mrb[0].mxu0 %v669
    %v705 = vpop.f32.mrb[0].mxu0
    %v706 = vadd.f32 0.0, %v705
    %v707 = vpop.f32.mrb[0].mxu0
    %v708 = vpop.f32.mrb[0].mxu0
    %v709 = vpop.f32.mrb[0].mxu0
    %710 = vdwg.mxu0
    %v711 = vadd.f32 %v200, %v706
    %v712 = vtanh.pop %v711
    %v713 = vmul.f32 %v712, 0.5
    %v714 = vadd.f32 %v713, 0.5
    %v715 = vmul.f32 %v714, %v652
    %717 = vrot.lane.b32.xlu0 %v712, 64
    %v718 = vpop.permute.xlu0 %717
    %v720 = vmul.f32 %v714, %v718
    %722 = vrot.lane.b32.xlu0 %v720, 32
    %v723 = vpop.permute.xlu0 %722
    %v725 = vadd.f32 %v715, %v723
    %v726 = vtanh.pop %v725
    %728 = vrot.lane.b32.xlu0 %v726, 64
    %v729 = vpop.permute.xlu0 %728
    %v731 = vmul.f32 %v714, %v729
    %733 = vrot.lane.b32.xlu0 %v731, 32
    %v734 = vpop.permute.xlu0 %733
    %736 = vst.msk [vmem:[#allocation2 + $0x30] sm:$0xff] %vm225, %v734
    %v737 = vpack.c.bf16 %v731, %v731
    %739 = vrot.lane.b32.xlu0 %v737, 32
    %v740 = vpop.permute.xlu0 %739
    %v742 = vsel %vm225, %v740, 0
    %744 = vmatprep.subr.bf16.mxu0 0
    %745 = vmatpush1.bf16.msra.mxu0 %v221
    %746 = vmatprep.subr.bf16.mxu0 0
    %747 = vmatpush1.bf16.msra.mxu0 %v222
    %748 = vmatprep.subr.bf16.mxu0 0
    %749 = vmatpush1.bf16.msra.mxu0 0
    %750 = vmatprep.subr.bf16.mxu0 0
    %751 = vmatpush1.bf16.msra.mxu0 0
    %752 = vmatprep.subr.bf16.mxu0 0
    %753 = vmatpush1.bf16.msra.mxu0 0
    %754 = vmatprep.subr.bf16.mxu0 0
    %755 = vmatpush1.bf16.msra.mxu0 0
    %756 = vmatprep.subr.bf16.mxu0 0
    %757 = vmatpush1.bf16.msra.mxu0 0
    %758 = vmatprep.subr.bf16.mxu0 0
    %759 = vmatpush1.bf16.msra.mxu0 0
    %760 = vmatprep.subr.bf16.mxu0 0
    %761 = vmatpush1.bf16.msra.mxu0 0
    %762 = vmatprep.subr.bf16.mxu0 0
    %763 = vmatpush1.bf16.msra.mxu0 0
    %764 = vmatprep.subr.bf16.mxu0 0
    %765 = vmatpush1.bf16.msra.mxu0 0
    %766 = vmatprep.subr.bf16.mxu0 0
    %767 = vmatpush1.bf16.msra.mxu0 0
    %768 = vmatprep.subr.bf16.mxu0 0
    %769 = vmatpush1.bf16.msra.mxu0 0
    %770 = vmatprep.subr.bf16.mxu0 0
    %771 = vmatpush1.bf16.msra.mxu0 0
    %772 = vmatprep.subr.bf16.mxu0 0
    %773 = vmatpush1.bf16.msra.mxu0 0
    %774 = vmatprep.subr.bf16.mxu0 0
    %775 = vmatpush1.bf16.msra.mxu0 0
    %776 = vmatprep.mubr.bf16.mxu0 0
    %777 = vmatmul.mubr.bf16.gmra.mrb[0].mxu0 %v742
    %v778 = vpop.f32.mrb[0].mxu0
    %v779 = vadd.f32 0.0, %v778
    %v780 = vpop.f32.mrb[0].mxu0
    %v781 = vpop.f32.mrb[0].mxu0
    %v782 = vpop.f32.mrb[0].mxu0
    %783 = vdwg.mxu0
    %v784 = vadd.f32 %v203, %v779
    %v785 = vtanh.pop %v784
    %v786 = vmul.f32 %v785, 0.5
    %v787 = vadd.f32 %v786, 0.5
    %v788 = vmul.f32 %v787, %v725
    %790 = vrot.lane.b32.xlu0 %v785, 64
    %v791 = vpop.permute.xlu0 %790
    %v793 = vmul.f32 %v787, %v791
    %795 = vrot.lane.b32.xlu0 %v793, 32
    %v796 = vpop.permute.xlu0 %795
    %v798 = vadd.f32 %v788, %v796
    %v799 = vtanh.pop %v798
    %801 = vrot.lane.b32.xlu0 %v799, 64
    %v802 = vpop.permute.xlu0 %801
    %v804 = vmul.f32 %v787, %v802
    %806 = vrot.lane.b32.xlu0 %v804, 32
    %v807 = vpop.permute.xlu0 %806
    %809 = vst.msk [vmem:[#allocation2 + $0x38] sm:$0xff] %vm225, %v807
    %810 = vst.msk [vmem:[#allocation12] sm:$0xff] %vm225, %v807
    %812 = vrot.lane.b32.xlu0 %v798, 96
    %v813 = vpop.permute.xlu0 %812
    %815 = vst.msk [vmem:[#allocation13] sm:$0xff] %vm225, %v813
    %v816 = vld [vmem:[#allocation2] sm:$0xff]
    %v817 = vld [vmem:[#allocation2 + $0x8] sm:$0xff]
    %v818 = vld [vmem:[#allocation2 + $0x10] sm:$0xff]
    %v819 = vld [vmem:[#allocation2 + $0x18] sm:$0xff]
    %v820 = vld [vmem:[#allocation2 + $0x20] sm:$0xff]
    %v821 = vld [vmem:[#allocation2 + $0x28] sm:$0xff]
    %v822 = vld [vmem:[#allocation2 + $0x30] sm:$0xff]
    %v823 = vld [vmem:[#allocation2 + $0x38] sm:$0xff]
    %v824 = vpack.c.bf16 %v817, %v816
    %v825 = vpack.c.bf16 %v819, %v818
    %v826 = vpack.c.bf16 %v821, %v820
    %v827 = vpack.c.bf16 %v823, %v822
    %v828 = vld [vmem:[#allocation9] sm:$0xf]
    %v829 = vld [vmem:[#allocation9 + $0x4] sm:$0xf]
    %v830 = vld [vmem:[#allocation9 + $0x8] sm:$0xf]
    %v831 = vld [vmem:[#allocation9 + $0xc] sm:$0xf]
    %v832 = vld [vmem:[%s8] sm:$0x1]
    %v834 = vlaneseq
    %v835 = vshrl.u32 %v834, 7
    %v836 = vsub.s32 0, %v835
    %v837 = vrot.slane %v832, %v836
    %v843 = vunpack.c.l.b16 %v828
    %v844 = vunpack.c.l.b16 %v829
    %v845 = vunpack.c.l.b16 %v830
    %v846 = vunpack.c.l.b16 %v831
    %v847 = vpack.c.b16 %v844, %v843
    %v848 = vpack.c.b16 %v846, %v845
    %v852 = vsel %vm225, %v824, 0
    %v855 = vsel %vm225, %v825, 0
    %v858 = vsel %vm225, %v826, 0
    %v861 = vsel %vm225, %v827, 0
    %863 = vmatprep.subr.bf16.mxu0 0
    %864 = vmatpush1.bf16.msra.mxu0 %v847
    %865 = vmatprep.subr.bf16.mxu0 0
    %866 = vmatpush1.bf16.msra.mxu0 %v848
    %867 = vmatprep.subr.bf16.mxu0 0
    %868 = vmatpush1.bf16.msra.mxu0 0
    %869 = vmatprep.subr.bf16.mxu0 0
    %870 = vmatpush1.bf16.msra.mxu0 0
    %871 = vmatprep.subr.bf16.mxu0 0
    %872 = vmatpush1.bf16.msra.mxu0 0
    %873 = vmatprep.subr.bf16.mxu0 0
    %874 = vmatpush1.bf16.msra.mxu0 0
    %875 = vmatprep.subr.bf16.mxu0 0
    %876 = vmatpush1.bf16.msra.mxu0 0
    %877 = vmatprep.subr.bf16.mxu0 0
    %878 = vmatpush1.bf16.msra.mxu0 0
    %879 = vmatprep.subr.bf16.mxu0 0
    %880 = vmatpush1.bf16.msra.mxu0 0
    %881 = vmatprep.subr.bf16.mxu0 0
    %882 = vmatpush1.bf16.msra.mxu0 0
    %883 = vmatprep.subr.bf16.mxu0 0
    %884 = vmatpush1.bf16.msra.mxu0 0
    %885 = vmatprep.subr.bf16.mxu0 0
    %886 = vmatpush1.bf16.msra.mxu0 0
    %887 = vmatprep.subr.bf16.mxu0 0
    %888 = vmatpush1.bf16.msra.mxu0 0
    %889 = vmatprep.subr.bf16.mxu0 0
    %890 = vmatpush1.bf16.msra.mxu0 0
    %891 = vmatprep.subr.bf16.mxu0 0
    %892 = vmatpush1.bf16.msra.mxu0 0
    %893 = vmatprep.subr.bf16.mxu0 0
    %894 = vmatpush1.bf16.msra.mxu0 0
    %895 = vmatprep.mubr.bf16.mxu0 0
    %896 = vmatmul.mubr.bf16.gmra.mrb[0].mxu0 %v852
    %v897 = vpop.f32.mrb[0].mxu0
    %v898 = vadd.f32 %v837, %v897
    %v899 = vpop.f32.mrb[0].mxu0
    %v900 = vpop.f32.mrb[0].mxu0
    %v901 = vadd.f32 %v837, %v900
    %v902 = vpop.f32.mrb[0].mxu0
    %903 = vmatprep.mubr.bf16.mxu0 0
    %904 = vmatmul.mubr.bf16.gmra.mrb[0].mxu0 %v855
    %v905 = vpop.f32.mrb[0].mxu0
    %v906 = vadd.f32 %v837, %v905
    %v907 = vpop.f32.mrb[0].mxu0
    %v908 = vpop.f32.mrb[0].mxu0
    %v909 = vadd.f32 %v837, %v908
    %v910 = vpop.f32.mrb[0].mxu0
    %911 = vmatprep.mubr.bf16.mxu0 0
    %912 = vmatmul.mubr.bf16.gmra.mrb[0].mxu0 %v858
    %v913 = vpop.f32.mrb[0].mxu0
    %v914 = vadd.f32 %v837, %v913
    %v915 = vpop.f32.mrb[0].mxu0
    %v916 = vpop.f32.mrb[0].mxu0
    %v917 = vadd.f32 %v837, %v916
    %v918 = vpop.f32.mrb[0].mxu0
    %919 = vmatprep.mubr.bf16.mxu0 0
    %920 = vmatmul.mubr.bf16.gmra.mrb[0].mxu0 %v861
    %v921 = vpop.f32.mrb[0].mxu0
    %v922 = vadd.f32 %v837, %v921
    %v923 = vpop.f32.mrb[0].mxu0
    %v924 = vpop.f32.mrb[0].mxu0
    %v925 = vadd.f32 %v837, %v924
    %v926 = vpop.f32.mrb[0].mxu0
    %927 = vdwg.mxu0
    %v928 = vld [vmem:[#allocation10] sm:$0xf]
    %v929 = vld [vmem:[#allocation10 + $0x4] sm:$0xf]
    %v930 = vld [vmem:[#allocation10 + $0x8] sm:$0xf]
    %v931 = vld [vmem:[#allocation10 + $0xc] sm:$0xf]
    %s932 = scalar_lea.vmem %s1, 8
    %v933 = vld [vmem:[%s932] sm:$0xff]
    %s934 = scalar_lea.vmem %s2, 8
    %v935 = vld [vmem:[%s934] sm:$0xff]
    %v936 = vpack.c.bf16 %v933, %v933
    %v941 = vunpack.c.l.b16 %v928
    %v942 = vunpack.c.l.b16 %v929
    %v943 = vunpack.c.l.b16 %v930
    %v944 = vunpack.c.l.b16 %v931
    %v945 = vpack.c.b16 %v942, %v941
    %v946 = vpack.c.b16 %v944, %v943
    %v950 = vsel %vm225, %v936, 0
    %952 = vmatprep.subr.bf16.mxu0 0
    %953 = vmatpush1.bf16.msra.mxu0 %v945
    %954 = vmatprep.subr.bf16.mxu0 0
    %955 = vmatpush1.bf16.msra.mxu0 %v946
    %956 = vmatprep.subr.bf16.mxu0 0
    %957 = vmatpush1.bf16.msra.mxu0 0
    %958 = vmatprep.subr.bf16.mxu0 0
    %959 = vmatpush1.bf16.msra.mxu0 0
    %960 = vmatprep.subr.bf16.mxu0 0
    %961 = vmatpush1.bf16.msra.mxu0 0
    %962 = vmatprep.subr.bf16.mxu0 0
    %963 = vmatpush1.bf16.msra.mxu0 0
    %964 = vmatprep.subr.bf16.mxu0 0
    %965 = vmatpush1.bf16.msra.mxu0 0
    %966 = vmatprep.subr.bf16.mxu0 0
    %967 = vmatpush1.bf16.msra.mxu0 0
    %968 = vmatprep.subr.bf16.mxu0 0
    %969 = vmatpush1.bf16.msra.mxu0 0
    %970 = vmatprep.subr.bf16.mxu0 0
    %971 = vmatpush1.bf16.msra.mxu0 0
    %972 = vmatprep.subr.bf16.mxu0 0
    %973 = vmatpush1.bf16.msra.mxu0 0
    %974 = vmatprep.subr.bf16.mxu0 0
    %975 = vmatpush1.bf16.msra.mxu0 0
    %976 = vmatprep.subr.bf16.mxu0 0
    %977 = vmatpush1.bf16.msra.mxu0 0
    %978 = vmatprep.subr.bf16.mxu0 0
    %979 = vmatpush1.bf16.msra.mxu0 0
    %980 = vmatprep.subr.bf16.mxu0 0
    %981 = vmatpush1.bf16.msra.mxu0 0
    %982 = vmatprep.subr.bf16.mxu0 0
    %983 = vmatpush1.bf16.msra.mxu0 0
    %984 = vmatprep.mubr.bf16.mxu0 0
    %985 = vmatmul.mubr.bf16.gmra.mrb[0].mxu0 %v950
    %v986 = vpop.f32.mrb[0].mxu0
    %v987 = vadd.f32 0.0, %v986
    %v988 = vpop.f32.mrb[0].mxu0
    %v989 = vpop.f32.mrb[0].mxu0
    %v990 = vpop.f32.mrb[0].mxu0
    %991 = vdwg.mxu0
    %v992 = vadd.f32 %v898, %v987
    %v993 = vtanh.pop %v992
    %v994 = vmul.f32 %v993, 0.5
    %v995 = vadd.f32 %v994, 0.5
    %997 = vrot.lane.b32.xlu0 %v935, 32
    %v998 = vpop.permute.xlu0 %997
    %v1000 = vmul.f32 %v995, %v998
    %1002 = vrot.lane.b32.xlu0 %v993, 64
    %v1003 = vpop.permute.xlu0 %1002
    %v1005 = vmul.f32 %v995, %v1003
    %1007 = vrot.lane.b32.xlu0 %v1005, 32
    %v1008 = vpop.permute.xlu0 %1007
    %v1010 = vadd.f32 %v1000, %v1008
    %v1011 = vtanh.pop %v1010
    %1013 = vrot.lane.b32.xlu0 %v1011, 64
    %v1014 = vpop.permute.xlu0 %1013
    %v1016 = vmul.f32 %v995, %v1014
    %v1017 = vpack.c.bf16 %v1016, %v1016
    %1019 = vrot.lane.b32.xlu0 %v1017, 32
    %v1020 = vpop.permute.xlu0 %1019
    %v1022 = vsel %vm225, %v1020, 0
    %1024 = vmatprep.subr.bf16.mxu0 0
    %1025 = vmatpush1.bf16.msra.mxu0 %v945
    %1026 = vmatprep.subr.bf16.mxu0 0
    %1027 = vmatpush1.bf16.msra.mxu0 %v946
    %1028 = vmatprep.subr.bf16.mxu0 0
    %1029 = vmatpush1.bf16.msra.mxu0 0
    %1030 = vmatprep.subr.bf16.mxu0 0
    %1031 = vmatpush1.bf16.msra.mxu0 0
    %1032 = vmatprep.subr.bf16.mxu0 0
    %1033 = vmatpush1.bf16.msra.mxu0 0
    %1034 = vmatprep.subr.bf16.mxu0 0
    %1035 = vmatpush1.bf16.msra.mxu0 0
    %1036 = vmatprep.subr.bf16.mxu0 0
    %1037 = vmatpush1.bf16.msra.mxu0 0
    %1038 = vmatprep.subr.bf16.mxu0 0
    %1039 = vmatpush1.bf16.msra.mxu0 0
    %1040 = vmatprep.subr.bf16.mxu0 0
    %1041 = vmatpush1.bf16.msra.mxu0 0
    %1042 = vmatprep.subr.bf16.mxu0 0
    %1043 = vmatpush1.bf16.msra.mxu0 0
    %1044 = vmatprep.subr.bf16.mxu0 0
    %1045 = vmatpush1.bf16.msra.mxu0 0
    %1046 = vmatprep.subr.bf16.mxu0 0
    %1047 = vmatpush1.bf16.msra.mxu0 0
    %1048 = vmatprep.subr.bf16.mxu0 0
    %1049 = vmatpush1.bf16.msra.mxu0 0
    %1050 = vmatprep.subr.bf16.mxu0 0
    %1051 = vmatpush1.bf16.msra.mxu0 0
    %1052 = vmatprep.subr.bf16.mxu0 0
    %1053 = vmatpush1.bf16.msra.mxu0 0
    %1054 = vmatprep.subr.bf16.mxu0 0
    %1055 = vmatpush1.bf16.msra.mxu0 0
    %1056 = vmatprep.mubr.bf16.mxu0 0
    %1057 = vmatmul.mubr.bf16.gmra.mrb[0].mxu0 %v1022
    %v1058 = vpop.f32.mrb[0].mxu0
    %v1059 = vadd.f32 0.0, %v1058
    %v1060 = vpop.f32.mrb[0].mxu0
    %v1061 = vpop.f32.mrb[0].mxu0
    %v1062 = vpop.f32.mrb[0].mxu0
    %1063 = vdwg.mxu0
    %v1064 = vadd.f32 %v901, %v1059
    %v1065 = vtanh.pop %v1064
    %v1066 = vmul.f32 %v1065, 0.5
    %v1067 = vadd.f32 %v1066, 0.5
    %v1068 = vmul.f32 %v1067, %v1010
    %1070 = vrot.lane.b32.xlu0 %v1065, 64
    %v1071 = vpop.permute.xlu0 %1070
    %v1073 = vmul.f32 %v1067, %v1071
    %1075 = vrot.lane.b32.xlu0 %v1073, 32
    %v1076 = vpop.permute.xlu0 %1075
    %v1078 = vadd.f32 %v1068, %v1076
    %v1079 = vtanh.pop %v1078
    %1081 = vrot.lane.b32.xlu0 %v1079, 64
    %v1082 = vpop.permute.xlu0 %1081
    %v1084 = vmul.f32 %v1067, %v1082
    %v1085 = vpack.c.bf16 %v1084, %v1084
    %1087 = vrot.lane.b32.xlu0 %v1085, 32
    %v1088 = vpop.permute.xlu0 %1087
    %v1090 = vsel %vm225, %v1088, 0
    %1092 = vmatprep.subr.bf16.mxu0 0
    %1093 = vmatpush1.bf16.msra.mxu0 %v945
    %1094 = vmatprep.subr.bf16.mxu0 0
    %1095 = vmatpush1.bf16.msra.mxu0 %v946
    %1096 = vmatprep.subr.bf16.mxu0 0
    %1097 = vmatpush1.bf16.msra.mxu0 0
    %1098 = vmatprep.subr.bf16.mxu0 0
    %1099 = vmatpush1.bf16.msra.mxu0 0
    %1100 = vmatprep.subr.bf16.mxu0 0
    %1101 = vmatpush1.bf16.msra.mxu0 0
    %1102 = vmatprep.subr.bf16.mxu0 0
    %1103 = vmatpush1.bf16.msra.mxu0 0
    %1104 = vmatprep.subr.bf16.mxu0 0
    %1105 = vmatpush1.bf16.msra.mxu0 0
    %1106 = vmatprep.subr.bf16.mxu0 0
    %1107 = vmatpush1.bf16.msra.mxu0 0
    %1108 = vmatprep.subr.bf16.mxu0 0
    %1109 = vmatpush1.bf16.msra.mxu0 0
    %1110 = vmatprep.subr.bf16.mxu0 0
    %1111 = vmatpush1.bf16.msra.mxu0 0
    %1112 = vmatprep.subr.bf16.mxu0 0
    %1113 = vmatpush1.bf16.msra.mxu0 0
    %1114 = vmatprep.subr.bf16.mxu0 0
    %1115 = vmatpush1.bf16.msra.mxu0 0
    %1116 = vmatprep.subr.bf16.mxu0 0
    %1117 = vmatpush1.bf16.msra.mxu0 0
    %1118 = vmatprep.subr.bf16.mxu0 0
    %1119 = vmatpush1.bf16.msra.mxu0 0
    %1120 = vmatprep.subr.bf16.mxu0 0
    %1121 = vmatpush1.bf16.msra.mxu0 0
    %1122 = vmatprep.subr.bf16.mxu0 0
    %1123 = vmatpush1.bf16.msra.mxu0 0
    %1124 = vmatprep.mubr.bf16.mxu0 0
    %1125 = vmatmul.mubr.bf16.gmra.mrb[0].mxu0 %v1090
    %v1126 = vpop.f32.mrb[0].mxu0
    %v1127 = vadd.f32 0.0, %v1126
    %v1128 = vpop.f32.mrb[0].mxu0
    %v1129 = vpop.f32.mrb[0].mxu0
    %v1130 = vpop.f32.mrb[0].mxu0
    %1131 = vdwg.mxu0
    %v1132 = vadd.f32 %v906, %v1127
    %v1133 = vtanh.pop %v1132
    %v1134 = vmul.f32 %v1133, 0.5
    %v1135 = vadd.f32 %v1134, 0.5
    %v1136 = vmul.f32 %v1135, %v1078
    %1138 = vrot.lane.b32.xlu0 %v1133, 64
    %v1139 = vpop.permute.xlu0 %1138
    %v1141 = vmul.f32 %v1135, %v1139
    %1143 = vrot.lane.b32.xlu0 %v1141, 32
    %v1144 = vpop.permute.xlu0 %1143
    %v1146 = vadd.f32 %v1136, %v1144
    %v1147 = vtanh.pop %v1146
    %1149 = vrot.lane.b32.xlu0 %v1147, 64
    %v1150 = vpop.permute.xlu0 %1149
    %v1152 = vmul.f32 %v1135, %v1150
    %v1153 = vpack.c.bf16 %v1152, %v1152
    %1155 = vrot.lane.b32.xlu0 %v1153, 32
    %v1156 = vpop.permute.xlu0 %1155
    %v1158 = vsel %vm225, %v1156, 0
    %1160 = vmatprep.subr.bf16.mxu0 0
    %1161 = vmatpush1.bf16.msra.mxu0 %v945
    %1162 = vmatprep.subr.bf16.mxu0 0
    %1163 = vmatpush1.bf16.msra.mxu0 %v946
    %1164 = vmatprep.subr.bf16.mxu0 0
    %1165 = vmatpush1.bf16.msra.mxu0 0
    %1166 = vmatprep.subr.bf16.mxu0 0
    %1167 = vmatpush1.bf16.msra.mxu0 0
    %1168 = vmatprep.subr.bf16.mxu0 0
    %1169 = vmatpush1.bf16.msra.mxu0 0
    %1170 = vmatprep.subr.bf16.mxu0 0
    %1171 = vmatpush1.bf16.msra.mxu0 0
    %1172 = vmatprep.subr.bf16.mxu0 0
    %1173 = vmatpush1.bf16.msra.mxu0 0
    %1174 = vmatprep.subr.bf16.mxu0 0
    %1175 = vmatpush1.bf16.msra.mxu0 0
    %1176 = vmatprep.subr.bf16.mxu0 0
    %1177 = vmatpush1.bf16.msra.mxu0 0
    %1178 = vmatprep.subr.bf16.mxu0 0
    %1179 = vmatpush1.bf16.msra.mxu0 0
    %1180 = vmatprep.subr.bf16.mxu0 0
    %1181 = vmatpush1.bf16.msra.mxu0 0
    %1182 = vmatprep.subr.bf16.mxu0 0
    %1183 = vmatpush1.bf16.msra.mxu0 0
    %1184 = vmatprep.subr.bf16.mxu0 0
    %1185 = vmatpush1.bf16.msra.mxu0 0
    %1186 = vmatprep.subr.bf16.mxu0 0
    %1187 = vmatpush1.bf16.msra.mxu0 0
    %1188 = vmatprep.subr.bf16.mxu0 0
    %1189 = vmatpush1.bf16.msra.mxu0 0
    %1190 = vmatprep.subr.bf16.mxu0 0
    %1191 = vmatpush1.bf16.msra.mxu0 0
    %1192 = vmatprep.mubr.bf16.mxu0 0
    %1193 = vmatmul.mubr.bf16.gmra.mrb[0].mxu0 %v1158
    %v1194 = vpop.f32.mrb[0].mxu0
    %v1195 = vadd.f32 0.0, %v1194
    %v1196 = vpop.f32.mrb[0].mxu0
    %v1197 = vpop.f32.mrb[0].mxu0
    %v1198 = vpop.f32.mrb[0].mxu0
    %1199 = vdwg.mxu0
    %v1200 = vadd.f32 %v909, %v1195
    %v1201 = vtanh.pop %v1200
    %v1202 = vmul.f32 %v1201, 0.5
    %v1203 = vadd.f32 %v1202, 0.5
    %v1204 = vmul.f32 %v1203, %v1146
    %1206 = vrot.lane.b32.xlu0 %v1201, 64
    %v1207 = vpop.permute.xlu0 %1206
    %v1209 = vmul.f32 %v1203, %v1207
    %1211 = vrot.lane.b32.xlu0 %v1209, 32
    %v1212 = vpop.permute.xlu0 %1211
    %v1214 = vadd.f32 %v1204, %v1212
    %v1215 = vtanh.pop %v1214
    %1217 = vrot.lane.b32.xlu0 %v1215, 64
    %v1218 = vpop.permute.xlu0 %1217
    %v1220 = vmul.f32 %v1203, %v1218
    %v1221 = vpack.c.bf16 %v1220, %v1220
    %1223 = vrot.lane.b32.xlu0 %v1221, 32
    %v1224 = vpop.permute.xlu0 %1223
    %v1226 = vsel %vm225, %v1224, 0
    %1228 = vmatprep.subr.bf16.mxu0 0
    %1229 = vmatpush1.bf16.msra.mxu0 %v945
    %1230 = vmatprep.subr.bf16.mxu0 0
    %1231 = vmatpush1.bf16.msra.mxu0 %v946
    %1232 = vmatprep.subr.bf16.mxu0 0
    %1233 = vmatpush1.bf16.msra.mxu0 0
    %1234 = vmatprep.subr.bf16.mxu0 0
    %1235 = vmatpush1.bf16.msra.mxu0 0
    %1236 = vmatprep.subr.bf16.mxu0 0
    %1237 = vmatpush1.bf16.msra.mxu0 0
    %1238 = vmatprep.subr.bf16.mxu0 0
    %1239 = vmatpush1.bf16.msra.mxu0 0
    %1240 = vmatprep.subr.bf16.mxu0 0
    %1241 = vmatpush1.bf16.msra.mxu0 0
    %1242 = vmatprep.subr.bf16.mxu0 0
    %1243 = vmatpush1.bf16.msra.mxu0 0
    %1244 = vmatprep.subr.bf16.mxu0 0
    %1245 = vmatpush1.bf16.msra.mxu0 0
    %1246 = vmatprep.subr.bf16.mxu0 0
    %1247 = vmatpush1.bf16.msra.mxu0 0
    %1248 = vmatprep.subr.bf16.mxu0 0
    %1249 = vmatpush1.bf16.msra.mxu0 0
    %1250 = vmatprep.subr.bf16.mxu0 0
    %1251 = vmatpush1.bf16.msra.mxu0 0
    %1252 = vmatprep.subr.bf16.mxu0 0
    %1253 = vmatpush1.bf16.msra.mxu0 0
    %1254 = vmatprep.subr.bf16.mxu0 0
    %1255 = vmatpush1.bf16.msra.mxu0 0
    %1256 = vmatprep.subr.bf16.mxu0 0
    %1257 = vmatpush1.bf16.msra.mxu0 0
    %1258 = vmatprep.subr.bf16.mxu0 0
    %1259 = vmatpush1.bf16.msra.mxu0 0
    %1260 = vmatprep.mubr.bf16.mxu0 0
    %1261 = vmatmul.mubr.bf16.gmra.mrb[0].mxu0 %v1226
    %v1262 = vpop.f32.mrb[0].mxu0
    %v1263 = vadd.f32 0.0, %v1262
    %v1264 = vpop.f32.mrb[0].mxu0
    %v1265 = vpop.f32.mrb[0].mxu0
    %v1266 = vpop.f32.mrb[0].mxu0
    %1267 = vdwg.mxu0
    %v1268 = vadd.f32 %v914, %v1263
    %v1269 = vtanh.pop %v1268
    %v1270 = vmul.f32 %v1269, 0.5
    %v1271 = vadd.f32 %v1270, 0.5
    %v1272 = vmul.f32 %v1271, %v1214
    %1274 = vrot.lane.b32.xlu0 %v1269, 64
    %v1275 = vpop.permute.xlu0 %1274
    %v1277 = vmul.f32 %v1271, %v1275
    %1279 = vrot.lane.b32.xlu0 %v1277, 32
    %v1280 = vpop.permute.xlu0 %1279
    %v1282 = vadd.f32 %v1272, %v1280
    %v1283 = vtanh.pop %v1282
    %1285 = vrot.lane.b32.xlu0 %v1283, 64
    %v1286 = vpop.permute.xlu0 %1285
    %v1288 = vmul.f32 %v1271, %v1286
    %v1289 = vpack.c.bf16 %v1288, %v1288
    %1291 = vrot.lane.b32.xlu0 %v1289, 32
    %v1292 = vpop.permute.xlu0 %1291
    %v1294 = vsel %vm225, %v1292, 0
    %1296 = vmatprep.subr.bf16.mxu0 0
    %1297 = vmatpush1.bf16.msra.mxu0 %v945
    %1298 = vmatprep.subr.bf16.mxu0 0
    %1299 = vmatpush1.bf16.msra.mxu0 %v946
    %1300 = vmatprep.subr.bf16.mxu0 0
    %1301 = vmatpush1.bf16.msra.mxu0 0
    %1302 = vmatprep.subr.bf16.mxu0 0
    %1303 = vmatpush1.bf16.msra.mxu0 0
    %1304 = vmatprep.subr.bf16.mxu0 0
    %1305 = vmatpush1.bf16.msra.mxu0 0
    %1306 = vmatprep.subr.bf16.mxu0 0
    %1307 = vmatpush1.bf16.msra.mxu0 0
    %1308 = vmatprep.subr.bf16.mxu0 0
    %1309 = vmatpush1.bf16.msra.mxu0 0
    %1310 = vmatprep.subr.bf16.mxu0 0
    %1311 = vmatpush1.bf16.msra.mxu0 0
    %1312 = vmatprep.subr.bf16.mxu0 0
    %1313 = vmatpush1.bf16.msra.mxu0 0
    %1314 = vmatprep.subr.bf16.mxu0 0
    %1315 = vmatpush1.bf16.msra.mxu0 0
    %1316 = vmatprep.subr.bf16.mxu0 0
    %1317 = vmatpush1.bf16.msra.mxu0 0
    %1318 = vmatprep.subr.bf16.mxu0 0
    %1319 = vmatpush1.bf16.msra.mxu0 0
    %1320 = vmatprep.subr.bf16.mxu0 0
    %1321 = vmatpush1.bf16.msra.mxu0 0
    %1322 = vmatprep.subr.bf16.mxu0 0
    %1323 = vmatpush1.bf16.msra.mxu0 0
    %1324 = vmatprep.subr.bf16.mxu0 0
    %1325 = vmatpush1.bf16.msra.mxu0 0
    %1326 = vmatprep.subr.bf16.mxu0 0
    %1327 = vmatpush1.bf16.msra.mxu0 0
    %1328 = vmatprep.mubr.bf16.mxu0 0
    %1329 = vmatmul.mubr.bf16.gmra.mrb[0].mxu0 %v1294
    %v1330 = vpop.f32.mrb[0].mxu0
    %v1331 = vadd.f32 0.0, %v1330
    %v1332 = vpop.f32.mrb[0].mxu0
    %v1333 = vpop.f32.mrb[0].mxu0
    %v1334 = vpop.f32.mrb[0].mxu0
    %1335 = vdwg.mxu0
    %v1336 = vadd.f32 %v917, %v1331
    %v1337 = vtanh.pop %v1336
    %v1338 = vmul.f32 %v1337, 0.5
    %v1339 = vadd.f32 %v1338, 0.5
    %v1340 = vmul.f32 %v1339, %v1282
    %1342 = vrot.lane.b32.xlu0 %v1337, 64
    %v1343 = vpop.permute.xlu0 %1342
    %v1345 = vmul.f32 %v1339, %v1343
    %1347 = vrot.lane.b32.xlu0 %v1345, 32
    %v1348 = vpop.permute.xlu0 %1347
    %v1350 = vadd.f32 %v1340, %v1348
    %v1351 = vtanh.pop %v1350
    %1353 = vrot.lane.b32.xlu0 %v1351, 64
    %v1354 = vpop.permute.xlu0 %1353
    %v1356 = vmul.f32 %v1339, %v1354
    %v1357 = vpack.c.bf16 %v1356, %v1356
    %1359 = vrot.lane.b32.xlu0 %v1357, 32
    %v1360 = vpop.permute.xlu0 %1359
    %v1362 = vsel %vm225, %v1360, 0
    %1364 = vmatprep.subr.bf16.mxu0 0
    %1365 = vmatpush1.bf16.msra.mxu0 %v945
    %1366 = vmatprep.subr.bf16.mxu0 0
    %1367 = vmatpush1.bf16.msra.mxu0 %v946
    %1368 = vmatprep.subr.bf16.mxu0 0
    %1369 = vmatpush1.bf16.msra.mxu0 0
    %1370 = vmatprep.subr.bf16.mxu0 0
    %1371 = vmatpush1.bf16.msra.mxu0 0
    %1372 = vmatprep.subr.bf16.mxu0 0
    %1373 = vmatpush1.bf16.msra.mxu0 0
    %1374 = vmatprep.subr.bf16.mxu0 0
    %1375 = vmatpush1.bf16.msra.mxu0 0
    %1376 = vmatprep.subr.bf16.mxu0 0
    %1377 = vmatpush1.bf16.msra.mxu0 0
    %1378 = vmatprep.subr.bf16.mxu0 0
    %1379 = vmatpush1.bf16.msra.mxu0 0
    %1380 = vmatprep.subr.bf16.mxu0 0
    %1381 = vmatpush1.bf16.msra.mxu0 0
    %1382 = vmatprep.subr.bf16.mxu0 0
    %1383 = vmatpush1.bf16.msra.mxu0 0
    %1384 = vmatprep.subr.bf16.mxu0 0
    %1385 = vmatpush1.bf16.msra.mxu0 0
    %1386 = vmatprep.subr.bf16.mxu0 0
    %1387 = vmatpush1.bf16.msra.mxu0 0
    %1388 = vmatprep.subr.bf16.mxu0 0
    %1389 = vmatpush1.bf16.msra.mxu0 0
    %1390 = vmatprep.subr.bf16.mxu0 0
    %1391 = vmatpush1.bf16.msra.mxu0 0
    %1392 = vmatprep.subr.bf16.mxu0 0
    %1393 = vmatpush1.bf16.msra.mxu0 0
    %1394 = vmatprep.subr.bf16.mxu0 0
    %1395 = vmatpush1.bf16.msra.mxu0 0
    %1396 = vmatprep.mubr.bf16.mxu0 0
    %1397 = vmatmul.mubr.bf16.gmra.mrb[0].mxu0 %v1362
    %v1398 = vpop.f32.mrb[0].mxu0
    %v1399 = vadd.f32 0.0, %v1398
    %v1400 = vpop.f32.mrb[0].mxu0
    %v1401 = vpop.f32.mrb[0].mxu0
    %v1402 = vpop.f32.mrb[0].mxu0
    %1403 = vdwg.mxu0
    %v1404 = vadd.f32 %v922, %v1399
    %v1405 = vtanh.pop %v1404
    %v1406 = vmul.f32 %v1405, 0.5
    %v1407 = vadd.f32 %v1406, 0.5
    %v1408 = vmul.f32 %v1407, %v1350
    %1410 = vrot.lane.b32.xlu0 %v1405, 64
    %v1411 = vpop.permute.xlu0 %1410
    %v1413 = vmul.f32 %v1407, %v1411
    %1415 = vrot.lane.b32.xlu0 %v1413, 32
    %v1416 = vpop.permute.xlu0 %1415
    %v1418 = vadd.f32 %v1408, %v1416
    %v1419 = vtanh.pop %v1418
    %1421 = vrot.lane.b32.xlu0 %v1419, 64
    %v1422 = vpop.permute.xlu0 %1421
    %v1424 = vmul.f32 %v1407, %v1422
    %v1425 = vpack.c.bf16 %v1424, %v1424
    %1427 = vrot.lane.b32.xlu0 %v1425, 32
    %v1428 = vpop.permute.xlu0 %1427
    %v1430 = vsel %vm225, %v1428, 0
    %1432 = vmatprep.subr.bf16.mxu0 0
    %1433 = vmatpush1.bf16.msra.mxu0 %v945
    %1434 = vmatprep.subr.bf16.mxu0 0
    %1435 = vmatpush1.bf16.msra.mxu0 %v946
    %1436 = vmatprep.subr.bf16.mxu0 0
    %1437 = vmatpush1.bf16.msra.mxu0 0
    %1438 = vmatprep.subr.bf16.mxu0 0
    %1439 = vmatpush1.bf16.msra.mxu0 0
    %1440 = vmatprep.subr.bf16.mxu0 0
    %1441 = vmatpush1.bf16.msra.mxu0 0
    %1442 = vmatprep.subr.bf16.mxu0 0
    %1443 = vmatpush1.bf16.msra.mxu0 0
    %1444 = vmatprep.subr.bf16.mxu0 0
    %1445 = vmatpush1.bf16.msra.mxu0 0
    %1446 = vmatprep.subr.bf16.mxu0 0
    %1447 = vmatpush1.bf16.msra.mxu0 0
    %1448 = vmatprep.subr.bf16.mxu0 0
    %1449 = vmatpush1.bf16.msra.mxu0 0
    %1450 = vmatprep.subr.bf16.mxu0 0
    %1451 = vmatpush1.bf16.msra.mxu0 0
    %1452 = vmatprep.subr.bf16.mxu0 0
    %1453 = vmatpush1.bf16.msra.mxu0 0
    %1454 = vmatprep.subr.bf16.mxu0 0
    %1455 = vmatpush1.bf16.msra.mxu0 0
    %1456 = vmatprep.subr.bf16.mxu0 0
    %1457 = vmatpush1.bf16.msra.mxu0 0
    %1458 = vmatprep.subr.bf16.mxu0 0
    %1459 = vmatpush1.bf16.msra.mxu0 0
    %1460 = vmatprep.subr.bf16.mxu0 0
    %1461 = vmatpush1.bf16.msra.mxu0 0
    %1462 = vmatprep.subr.bf16.mxu0 0
    %1463 = vmatpush1.bf16.msra.mxu0 0
    %1464 = vmatprep.mubr.bf16.mxu0 0
    %1465 = vmatmul.mubr.bf16.gmra.mrb[0].mxu0 %v1430
    %v1466 = vpop.f32.mrb[0].mxu0
    %v1467 = vadd.f32 0.0, %v1466
    %v1468 = vpop.f32.mrb[0].mxu0
    %v1469 = vpop.f32.mrb[0].mxu0
    %v1470 = vpop.f32.mrb[0].mxu0
    %1471 = vdwg.mxu0
    %v1472 = vadd.f32 %v925, %v1467
    %v1473 = vtanh.pop %v1472
    %v1474 = vmul.f32 %v1473, 0.5
    %v1475 = vadd.f32 %v1474, 0.5
    %v1476 = vmul.f32 %v1475, %v1418
    %1478 = vrot.lane.b32.xlu0 %v1473, 64
    %v1479 = vpop.permute.xlu0 %1478
    %v1481 = vmul.f32 %v1475, %v1479
    %1483 = vrot.lane.b32.xlu0 %v1481, 32
    %v1484 = vpop.permute.xlu0 %1483
    %v1486 = vadd.f32 %v1476, %v1484
    %v1487 = vtanh.pop %v1486
    %1489 = vrot.lane.b32.xlu0 %v1487, 64
    %v1490 = vpop.permute.xlu0 %1489
    %v1492 = vmul.f32 %v1475, %v1490
    %1494 = vrot.lane.b32.xlu0 %v1492, 32
    %v1495 = vpop.permute.xlu0 %1494
    %s1497 = scalar_lea.vmem [#allocation12], 8
    %1498 = vst.msk [vmem:[%s1497] sm:$0xff] %vm225, %v1495
    %1500 = vrot.lane.b32.xlu0 %v1486, 96
    %v1501 = vpop.permute.xlu0 %1500
    %s1503 = scalar_lea.vmem [#allocation13], 8
    %1504 = vst.msk [vmem:[%s1503] sm:$0xff] %vm225, %v1501
    %v1505 = vld [vmem:[%s9] sm:$0xff]
    %v1506 = vld [vmem:[%s9 + $0x8] sm:$0xff]
    %v1507 = vld [vmem:[%s9 + $0x10] sm:$0xff]
    %v1508 = vld [vmem:[%s9 + $0x18] sm:$0xff]
    %v1509 = vld [vmem:[#allocation3] sm:$0x1]
    %v1511 = vlaneseq
    %v1512 = vshrl.u32 %v1511, 7
    %v1513 = vsub.s32 0, %v1512
    %v1514 = vrot.slane %v1509, %v1513
    %v1516 = vsel %vm225, %v1495, 0
    %1518 = vmatprep.subr.mxu0 0.0
    %1519 = vmatpush1.msra.mxu0 %v1505
    %1520 = vmatprep.subr.mxu0 0.0
    %1521 = vmatpush1.msra.mxu0 %v1506
    %1522 = vmatprep.subr.mxu0 0.0
    %1523 = vmatpush1.msra.mxu0 %v1507
    %1524 = vmatprep.subr.mxu0 0.0
    %1525 = vmatpush1.msra.mxu0 %v1508
    %1526 = vmatprep.subr.mxu0 0.0
    %1527 = vmatpush1.msra.mxu0 0.0
    %1528 = vmatprep.subr.mxu0 0.0
    %1529 = vmatpush1.msra.mxu0 0.0
    %1530 = vmatprep.subr.mxu0 0.0
    %1531 = vmatpush1.msra.mxu0 0.0
    %1532 = vmatprep.subr.mxu0 0.0
    %1533 = vmatpush1.msra.mxu0 0.0
    %1534 = vmatprep.subr.mxu0 0.0
    %1535 = vmatpush1.msra.mxu0 0.0
    %1536 = vmatprep.subr.mxu0 0.0
    %1537 = vmatpush1.msra.mxu0 0.0
    %1538 = vmatprep.subr.mxu0 0.0
    %1539 = vmatpush1.msra.mxu0 0.0
    %1540 = vmatprep.subr.mxu0 0.0
    %1541 = vmatpush1.msra.mxu0 0.0
    %1542 = vmatprep.subr.mxu0 0.0
    %1543 = vmatpush1.msra.mxu0 0.0
    %1544 = vmatprep.subr.mxu0 0.0
    %1545 = vmatpush1.msra.mxu0 0.0
    %1546 = vmatprep.subr.mxu0 0.0
    %1547 = vmatpush1.msra.mxu0 0.0
    %1548 = vmatprep.subr.mxu0 0.0
    %1549 = vmatpush1.msra.mxu0 0.0
    %1550 = vmatprep.subr.mxu0 0.0
    %1551 = vmatpush1.msra.mxu0 0.0
    %1552 = vmatprep.subr.mxu0 0.0
    %1553 = vmatpush1.msra.mxu0 0.0
    %1554 = vmatprep.subr.mxu0 0.0
    %1555 = vmatpush1.msra.mxu0 0.0
    %1556 = vmatprep.subr.mxu0 0.0
    %1557 = vmatpush1.msra.mxu0 0.0
    %1558 = vmatprep.subr.mxu0 0.0
    %1559 = vmatpush1.msra.mxu0 0.0
    %1560 = vmatprep.subr.mxu0 0.0
    %1561 = vmatpush1.msra.mxu0 0.0
    %1562 = vmatprep.subr.mxu0 0.0
    %1563 = vmatpush1.msra.mxu0 0.0
    %1564 = vmatprep.subr.mxu0 0.0
    %1565 = vmatpush1.msra.mxu0 0.0
    %1566 = vmatprep.subr.mxu0 0.0
    %1567 = vmatpush1.msra.mxu0 0.0
    %1568 = vmatprep.subr.mxu0 0.0
    %1569 = vmatpush1.msra.mxu0 0.0
    %1570 = vmatprep.subr.mxu0 0.0
    %1571 = vmatpush1.msra.mxu0 0.0
    %1572 = vmatprep.subr.mxu0 0.0
    %1573 = vmatpush1.msra.mxu0 0.0
    %1574 = vmatprep.subr.mxu0 0.0
    %1575 = vmatpush1.msra.mxu0 0.0
    %1576 = vmatprep.subr.mxu0 0.0
    %1577 = vmatpush1.msra.mxu0 0.0
    %1578 = vmatprep.subr.mxu0 0.0
    %1579 = vmatpush1.msra.mxu0 0.0
    %1580 = vmatprep.subr.mxu0 0.0
    %1581 = vmatpush1.msra.mxu0 0.0
    %1582 = vmatprep.mubr.f32.mxu0 0.0
    %1583 = vmatmul.mubr.f32.gmra.mrb[0].mxu0 %v1516
    %v1584 = vpop.f32.mrb[0].mxu0
    %v1585 = vadd.f32 %v1514, %v1584
    %v1586 = vpop.f32.mrb[0].mxu0
    %1587 = vdwg.mxu0
    %v1588 = vxor.u32 %v1585, 2147483648
    %v1589 = vmul.f32 %v1588, 1.442695
    %v1590 = vpow.pop %v1589
    %v1591 = vadd.f32 %v1590, 1.0
    %v1592 = vrcp.pop %v1591
    %v1593 = vmul.f32 1.0, %v1592
    %vm1594 = vcmask 7168
    %1595 = vst.msk [vmem:[%s11] sm:$0xff] %vm1594, %v1593
    // Predicated region
    $region62: #{tpu_custom_call.1} parent=1 // pred_check
      _
    $region63: #{tpu_custom_call.1} parent=1 // pred_check_branch
      %1597 = sbr.rel (0) target = $region65
    $region64: #{tpu_custom_call.1} parent=1 // pred_region
      _
    $region65: #{tpu_custom_call.1} parent=1 // pred_fallthru
      _
    // Predicated region
    $region66: #{tpu_custom_call.1} parent=1 // pred_check
      _
    $region67: #{tpu_custom_call.1} parent=1 // pred_check_branch
      %1599 = sbr.rel (0) target = $region69
    $region68: #{tpu_custom_call.1} parent=1 // pred_region
      %s1601 = ssub.s32 256, 256
      %1602 = vsyncadd [#allocation6], %s1601
      %s1603 = sshll.u32 [#allocation12], 4
      %s1604 = int_to_ptr.vmem [resolvable:$true] %s1603
      %1609 = dma.vmem_to_hbm [thread:$0]  %s1604, 256, %s12, [#allocation6], 128, 128, 8
    $region69: #{tpu_custom_call.1} parent=1 // pred_fallthru
      _
    // Predicated region
    $region70: #{tpu_custom_call.1} parent=1 // pred_check
      _
    $region71: #{tpu_custom_call.1} parent=1 // pred_check_branch
      %1611 = sbr.rel (0) target = $region73
    $region72: #{tpu_custom_call.1} parent=1 // pred_region
      %s1613 = ssub.s32 256, 256
      %1614 = vsyncadd [#allocation14], %s1613
      %s1615 = sshll.u32 [#allocation13], 4
      %s1616 = int_to_ptr.vmem [resolvable:$true] %s1615
      %1621 = dma.vmem_to_hbm [thread:$0]  %s1616, 256, %s13, [#allocation14], 128, 128, 8
    $region73: #{tpu_custom_call.1} parent=1 // pred_fallthru
      _
    // Predicated region
    $region74: #{tpu_custom_call.1} parent=1 // pred_check
      _
    $region75: #{tpu_custom_call.1} parent=1 // pred_check_branch
      %1623 = sbr.rel (0) target = $region77
    $region76: #{tpu_custom_call.1} parent=1 // pred_region
      _
    $region77: #{tpu_custom_call.1} parent=1 // pred_fallthru
      _
    // Predicated region
    $region78: #{tpu_custom_call.1} parent=1 // pred_check
      _
    $region79: #{tpu_custom_call.1} parent=1 // pred_check_branch
      %1625 = sbr.rel (0) target = $region81
    $region80: #{tpu_custom_call.1} parent=1 // pred_region
      %1626 = dma.done [#allocation6], 256
    $region81: #{tpu_custom_call.1} parent=1 // pred_fallthru
      _
    // Predicated region
    $region82: #{tpu_custom_call.1} parent=1 // pred_check
      _
    $region83: #{tpu_custom_call.1} parent=1 // pred_check_branch
      %1628 = sbr.rel (0) target = $region85
    $region84: #{tpu_custom_call.1} parent=1 // pred_region
      %1629 = dma.done [#allocation14], 256
    $region85: #{tpu_custom_call.1} parent=1 // pred_fallthru
      _
    %1630 = vsyncpa [#allocation5], 1
    %1631 = vsyncpa [#allocation8], 1
    %1632 = vsyncpa [#allocation11], 1
    %1633 = vsyncpa [#allocation6], 1
    %1634 = vsyncpa [#allocation14], 1

</llo_original>
